<compile_context>
chip_gen: v5e
topology: v5e:2x2
jax: 0.10.0
libtpu: 0.0.40
codegen_flags: <defaults>
</compile_context>

<pallas_src>
import jax
import jax.numpy as jnp
from jax import lax
from jax.experimental import pallas as pl
from jax.experimental.pallas import tpu as pltpu


# ----------------------------------------------------------------------------
# VMEM budgeting (generation-aware) and tile pickers
# ----------------------------------------------------------------------------
def _vmem_budget_bytes():
    """Scoped-VMEM budget: ~60% of physical VMEM, capped at 48 MiB.
    v5e/v6e (128 MiB) -> 48 MiB; v7x (64 MiB) -> ~38 MiB."""
    try:
        cap = int(pltpu.get_tpu_info().vmem_capacity_bytes)
    except Exception:
        cap = 128 * 1024 * 1024
    return min(int(cap * 0.6), 48 * 1024 * 1024)


def _pick_query_tile(sd, chid, cin, budget):
    """Largest lane-aligned (multiple of 128) divisor of `sd` whose (TQ, Sd)
    softmax temporaries fit the VMEM budget; full extent for small shapes."""
    fixed = (2 * (2 * chid + 1) + 4 * cin) * sd          # kv scratch + frq block
    per_q = 10 * sd                                      # f32 scores + bf16 probs
    cap = (budget - fixed) // per_q
    cap = max(min(cap, 2048), 128)
    if sd <= cap:
        return sd
    cap = (cap // 128) * 128
    for t in range(cap, 127, -128):
        if sd % t == 0:
            return t
    # TODO(synk): no aligned divisor fits the budget -> needs online-softmax
    #             KV tiling; fall back to a single full tile.
    return sd


def _pick_row_tile(H, cout, W, budget=8 * 1024 * 1024):
    """Output-row tile for the fused upsample/residual kernel (multiple of 8
    dividing H, or the full extent)."""
    bytes_per_row = 4 * cout * W * 4                     # ~2x dbl-buffered f32 blocks
    if H * bytes_per_row <= budget or H <= 8:
        return H
    cap = max((budget // bytes_per_row) // 8 * 8, 8)
    for t in range(min(cap, H), 7, -8):
        if H % t == 0:
            return t
    return H


# ----------------------------------------------------------------------------
# Kernel 1: projections + attention + conv4(+BN) at pooled resolution
# ----------------------------------------------------------------------------
def _attn_conv4_kernel(rgb_ref, frq_ref, wqT_ref, bq_ref, wkvT_ref, bkv_ref,
                       w4T_ref, b4_ref, out_ref, kv_ref):
    """Per (batch, query-tile) step.

    Blocks (all channels-first, lane axis = spatial):
      rgb_ref  : (1, Cin, TQ)      pooled rgb, bf16
      frq_ref  : (1, Cin, Sd)      pooled freq, bf16 (resident per batch)
      wqT_ref  : (Chid, Cin)       softmax scale folded in, bf16
      bq_ref   : (Chid, 1)         f32 (scale folded in)
      wkvT_ref : (2*Chid, Cin)     [Wk^T ; Wv^T], bf16
      bkv_ref  : (2*Chid, 1)       f32
      w4T_ref  : (Cout, Chid)      conv4 with BN scale folded, bf16
      b4_ref   : (Cout, 1)         conv4 bias + BN shift folded, f32
      out_ref  : (1, Cout, TQ)     bf16, lane-dense store
      kv_ref   : (2*Chid+1, Sd)    VMEM scratch: k rows, v rows, ones row (bf16)
    """
    chid = wqT_ref.shape[0]
    sd = kv_ref.shape[1]

    # k/v projection hoisted: computed once per batch (qi == 0), cached bf16.
    @pl.when(pl.program_id(1) == 0)
    def _():
        kv = jnp.dot(wkvT_ref[...], frq_ref[0],
                     preferred_element_type=jnp.float32) + bkv_ref[...]
        kv_ref[0:2 * chid, :] = kv.astype(jnp.bfloat16)
        # ones row: the PV matmul then also produces the softmax denominator.
        kv_ref[2 * chid:2 * chid + 1, :] = jnp.ones((1, sd), jnp.bfloat16)

    # q projection, channels-first: (Chid, TQ) -- native MXU form.
    q = jnp.dot(wqT_ref[...], rgb_ref[0],
                preferred_element_type=jnp.float32) + bq_ref[...]

    # scores: s[i, j] = sum_c q[c, i] * k[c, j]  -> (TQ, Sd)  (TN dot_general)
    k = kv_ref[0:chid, :]
    s = lax.dot_general(q.astype(jnp.bfloat16), k,
                        dimension_numbers=(((0,), (0,)), ((), ())),
                        preferred_element_type=jnp.float32)

    # numerically-stable softmax numerator (f32 exp; normalization deferred).
    # TODO(synk): bf16 exp on v6e/v7x EUP (keep f32 on v5e).
    s_max = jnp.max(s, axis=-1, keepdims=True)
    p = jnp.exp(s - s_max).astype(jnp.bfloat16)          # (TQ, Sd)

    # PV (+ denominator via ones row): z_ext[c, i] = sum_j v_ext[c, j] p[i, j]
    v_ext = kv_ref[chid:2 * chid + 1, :]                 # (Chid+1, Sd)
    z_ext = lax.dot_general(v_ext, p,
                            dimension_numbers=(((1,), (1,)), ((), ())),
                            preferred_element_type=jnp.float32)   # (Chid+1, TQ)

    # deferred normalization on the small (Chid, TQ) result; denom on the EUP.
    inv = pl.reciprocal(z_ext[chid:chid + 1, :], approx=True)     # (1, TQ)
    z = z_ext[0:chid, :] * inv                                     # (Chid, TQ)

    # conv4 (1x1) + folded eval-mode BN affine at pooled resolution.
    y = jnp.dot(w4T_ref[...], z.astype(jnp.bfloat16),
                preferred_element_type=jnp.float32) + b4_ref[...]
    out_ref[0] = y.astype(out_ref.dtype)


def cma_attention_conv4(rgb_cf, frq_cf, wqT, bq, wkvT, bkv, w4T, b4, *, budget):
    B, Cin, Sd = rgb_cf.shape
    Chid = wqT.shape[0]
    Cout = w4T.shape[0]
    TQ = _pick_query_tile(Sd, Chid, Cin, budget)
    n_q = Sd // TQ

    flops = int(2 * B * Sd * (3 * Cin * Chid + Sd * (2 * Chid + 1) + Chid * Cout))
    transcendentals = int(B * Sd * (Sd + 1))
    bytes_accessed = int(B * Sd * (2 * Cin * 2 + Cout * 2)
                         + (3 * Cin * Chid + Chid * Cout) * 2
                         + (3 * Chid + Cout) * 4)

    return pl.pallas_call(
        _attn_conv4_kernel,
        out_shape=jax.ShapeDtypeStruct((B, Cout, Sd), jnp.bfloat16),
        grid=(B, n_q),
        in_specs=[
            pl.BlockSpec((1, Cin, TQ), lambda b, qi: (b, 0, qi)),
            pl.BlockSpec((1, Cin, Sd), lambda b, qi: (b, 0, 0)),
            # constant index_map -> weights stay resident across grid steps
            pl.BlockSpec((Chid, Cin), lambda b, qi: (0, 0)),
            pl.BlockSpec((Chid, 1), lambda b, qi: (0, 0)),
            pl.BlockSpec((2 * Chid, Cin), lambda b, qi: (0, 0)),
            pl.BlockSpec((2 * Chid, 1), lambda b, qi: (0, 0)),
            pl.BlockSpec((Cout, Chid), lambda b, qi: (0, 0)),
            pl.BlockSpec((Cout, 1), lambda b, qi: (0, 0)),
        ],
        out_specs=pl.BlockSpec((1, Cout, TQ), lambda b, qi: (b, 0, qi)),
        scratch_shapes=[pltpu.VMEM((2 * Chid + 1, Sd), jnp.bfloat16)],
        compiler_params=pltpu.CompilerParams(
            dimension_semantics=("parallel", "arbitrary"),
            vmem_limit_bytes=budget),
        cost_estimate=pl.CostEstimate(flops=flops,
                                      transcendentals=transcendentals,
                                      bytes_accessed=bytes_accessed),
    )(rgb_cf, frq_cf, wqT, bq, wkvT, bkv, w4T, b4)


# ----------------------------------------------------------------------------
# Kernel 2: fused bilinear x2 upsample (separable matmuls) + LeakyReLU + residual
# ----------------------------------------------------------------------------
def _upsample_act_residual_kernel(y_ref, uh_ref, uw_ref, rgb_ref, out_ref):
    """Blocks:
      y_ref   : (1, Cout, h, w)   pooled conv4+BN output, bf16 (resident/batch)
      uh_ref  : (TH, h)           row-interpolation matrix tile, bf16
      uw_ref  : (W, w)            col-interpolation matrix, bf16
      rgb_ref : (1, Cout, TH, W)  residual input, f32
      out_ref : (1, Cout, TH, W)  f32
    """
    cout = y_ref.shape[1]
    uh = uh_ref[...]
    uw = uw_ref[...]
    for c in range(cout):                                # static unroll (small Cout)
        yc = y_ref[0, c]                                 # (h, w) bf16
        t = jnp.dot(uh, yc, preferred_element_type=jnp.float32)      # (TH, w)
        up = lax.dot_general(t.astype(jnp.bfloat16), uw,
                             dimension_numbers=(((1,), (1,)), ((), ())),
                             preferred_element_type=jnp.float32)     # (TH, W)
        act = jnp.where(up >= 0.0, up, 0.2 * up)
        out_ref[0, c] = rgb_ref[0, c] + act


def cma_upsample_act_residual(y_down, uh, uw, rgb, *, budget):
    B, Cout, h, w = y_down.shape
    _, _, H, W = rgb.shape
    TH = _pick_row_tile(H, Cout, W)
    n_r = H // TH
    return pl.pallas_call(
        _upsample_act_residual_kernel,
        out_shape=jax.ShapeDtypeStruct((B, Cout, H, W), jnp.float32),
        grid=(B, n_r),
        in_specs=[
            pl.BlockSpec((1, Cout, h, w), lambda b, r: (b, 0, 0, 0)),
            pl.BlockSpec((TH, h), lambda b, r: (r, 0)),
            pl.BlockSpec((W, w), lambda b, r: (0, 0)),
            pl.BlockSpec((1, Cout, TH, W), lambda b, r: (b, 0, r, 0)),
        ],
        out_specs=pl.BlockSpec((1, Cout, TH, W), lambda b, r: (b, 0, r, 0)),
        compiler_params=pltpu.CompilerParams(
            dimension_semantics=("parallel", "parallel"),
            vmem_limit_bytes=budget),
    )(y_down, uh, uw, rgb)


# ----------------------------------------------------------------------------
# Plain-JAX glue (cheap, pooled-resolution / tiny tensors only)
# ----------------------------------------------------------------------------
def avg_pool_2x2(x):  # (B, C, H, W) -> (B, C, H//2, W//2)
    B, C, H, W = x.shape
    return x.reshape(B, C, H // 2, 2, W // 2, 2).mean(axis=(3, 5))


def _bilinear_matrix(n_in, n_out):
    """(n_out, n_in) align_corners=True interpolation matrix (rows sum to 1)."""
    src = jnp.arange(n_out, dtype=jnp.float32) * (n_in - 1) / (n_out - 1)
    lo = jnp.floor(src).astype(jnp.int32)
    hi = jnp.minimum(lo + 1, n_in - 1)
    frac = src - lo.astype(jnp.float32)
    return (jax.nn.one_hot(lo, n_in) * (1.0 - frac)[:, None]
            + jax.nn.one_hot(hi, n_in) * frac[:, None])


def cma_block_forward(rgb, freq, params):
    """rgb, freq: (B, C_in, H, W) float32, NCHW (PyTorch convention)."""
    B, Cin, H, W = rgb.shape
    assert H % 2 == 0 and W % 2 == 0, "2x2 avg-pool + x2 upsample need even H, W"
    h, w = H // 2, W // 2
    Sd = h * w
    Chid = params["wq"].shape[1]
    Cout = params["w4"].shape[1]
    scale = Chid ** (-0.5)
    budget = _vmem_budget_bytes()

    rgb_down = avg_pool_2x2(rgb).reshape(B, Cin, Sd).astype(jnp.bfloat16)
    frq_down = avg_pool_2x2(freq).reshape(B, Cin, Sd).astype(jnp.bfloat16)

    # ---- wrapper-side weight plumbing (tiny tensors, done once) ----
    wqT = (params["wq"] * scale).T.astype(jnp.bfloat16)                  # (Chid, Cin)
    bq = (params["bq"] * scale).reshape(Chid, 1).astype(jnp.float32)     # (Chid, 1)
    wkvT = jnp.concatenate([params["wk"].T, params["wv"].T],
                           axis=0).astype(jnp.bfloat16)                  # (2Chid, Cin)
    bkv = jnp.concatenate([params["bk"], params["bv"]],
                          axis=1).reshape(2 * Chid, 1).astype(jnp.float32)
    w4T = (params["w4"] * params["fused_scale"]).T.astype(jnp.bfloat16)  # (Cout, Chid)
    b4 = params["fused_bias"].reshape(Cout, 1).astype(jnp.float32)

    # kernel 1: projections + attention + conv4(+BN) at pooled resolution
    y_down = cma_attention_conv4(rgb_down, frq_down, wqT, bq, wkvT, bkv,
                                 w4T, b4, budget=budget)                 # bf16
    y_down = y_down.reshape(B, Cout, h, w)                               # no-op reshape

    # kernel 2: fused bilinear x2 upsample + LeakyReLU(0.2) + residual
    uh = _bilinear_matrix(h, H).astype(jnp.bfloat16)                     # (H, h)
    uw = _bilinear_matrix(w, W).astype(jnp.bfloat16)                     # (W, w)
    return cma_upsample_act_residual(y_down, uh, uw, rgb, budget=budget)


# ----------------------------------------------------------------------------
# Pure-JAX f32 reference following the original PyTorch op order
# ----------------------------------------------------------------------------
def _upsample_bilinear_x2_ref(x):  # (B, C, h, w) -> (B, C, 2h, 2w)
    B, C, h, w = x.shape
    H, W = 2 * h, 2 * w

    def coords(n_in, n_out):
        src = jnp.arange(n_out, dtype=jnp.float32) * (n_in - 1) / (n_out - 1)
        lo = jnp.floor(src).astype(jnp.int32)
        hi = jnp.minimum(lo + 1, n_in - 1)
        return src - lo.astype(jnp.float32), lo, hi

    fh, lh, hh = coords(h, H)
    fw, lw, hw = coords(w, W)
    xh = (x[:, :, lh, :] * (1.0 - fh)[None, None, :, None]
          + x[:, :, hh, :] * fh[None, None, :, None])
    return (xh[:, :, :, lw] * (1.0 - fw)[None, None, None, :]
            + xh[:, :, :, hw] * fw[None, None, None, :])


def cma_block_reference(rgb, freq, params):
    B, Cin, H, W = rgb.shape
    Chid = params["wq"].shape[1]
    Cout = params["w4"].shape[1]
    h, w = H // 2, W // 2
    rgb_bsc = avg_pool_2x2(rgb).reshape(B, Cin, h * w).transpose(0, 2, 1)
    frq_bsc = avg_pool_2x2(freq).reshape(B, Cin, h * w).transpose(0, 2, 1)
    q = rgb_bsc @ params["wq"] + params["bq"]
    k = frq_bsc @ params["wk"] + params["bk"]
    v = frq_bsc @ params["wv"] + params["bv"]
    attn = jnp.einsum("bqc,bkc->bqk", q, k) * (Chid ** (-0.5))
    m = jax.nn.softmax(attn, axis=-1)
    z = jnp.einsum("bqk,bkc->bqc", m, v)
    z_nchw = z.reshape(B, h, w, Chid).transpose(0, 3, 1, 2)
    z_up = _upsample_bilinear_x2_ref(z_nchw)
    z_up_bsc = z_up.reshape(B, Chid, H * W).transpose(0, 2, 1)
    x4 = z_up_bsc @ params["w4"]
    y = x4 * params["fused_scale"] + params["fused_bias"]
    y = jnp.where(y >= 0.0, y, 0.2 * y)
    out = rgb.reshape(B, Cin, H * W).transpose(0, 2, 1) + y
    return out.transpose(0, 2, 1).reshape(B, Cout, H, W)


# ----------------------------------------------------------------------------
# Deterministic parameter construction (1x1 convs as matrices; BN folded, eval)
# ----------------------------------------------------------------------------
def init_params(key, in_channel, hidden_channel, out_channel):
    ks = jax.random.split(key, 12)

    def wgt(k, shape, s=0.1):
        return (s * jax.random.normal(k, shape)).astype(jnp.float32)

    wq = wgt(ks[0], (in_channel, hidden_channel))
    bq = wgt(ks[1], (1, hidden_channel))
    wk = wgt(ks[2], (in_channel, hidden_channel))
    bk = wgt(ks[3], (1, hidden_channel))
    wv = wgt(ks[4], (in_channel, hidden_channel))
    bv = wgt(ks[5], (1, hidden_channel))
    w4 = wgt(ks[6], (hidden_channel, out_channel))
    b4 = wgt(ks[7], (1, out_channel))

    # BatchNorm2d (eval mode) deterministic statistics / affine params.
    gamma = 1.0 + wgt(ks[8], (1, out_channel))
    beta = wgt(ks[9], (1, out_channel))
    run_mean = wgt(ks[10], (1, out_channel))
    run_var = 1.0 + jnp.abs(wgt(ks[11], (1, out_channel)))
    eps = 1e-5
    s = gamma / jnp.sqrt(run_var + eps)
    fused_scale = s.astype(jnp.float32)
    fused_bias = (b4 * s + beta - run_mean * s).astype(jnp.float32)

    return dict(wq=wq, bq=bq, wk=wk, bk=bk, wv=wv, bv=bv,
                w4=w4, fused_scale=fused_scale, fused_bias=fused_bias)


# ----------------------------------------------------------------------------
if __name__ == "__main__":
    B, C_in, C_hid, C_out = 2, 4, 8, 4     # residual requires C_out == C_in
    H = W = 16

    key = jax.random.PRNGKey(0)
    k_rgb, k_freq, k_params = jax.random.split(key, 3)
    rgb = jax.random.normal(k_rgb, (B, C_in, H, W), dtype=jnp.float32)
    freq = jax.random.normal(k_freq, (B, C_in, H, W), dtype=jnp.float32)
    params = init_params(k_params, C_in, C_hid, C_out)

    fwd = jax.jit(cma_block_forward)
    out = jax.block_until_ready(fwd(rgb, freq, params))
    ref = jax.block_until_ready(cma_block_reference(rgb, freq, params))

    assert out.shape == (B, C_out, H, W)
    assert bool(jnp.all(jnp.isfinite(out)))
    # bf16 matmul operands / bf16 intermediate + approx reciprocal -> loose tol.
    max_err = float(jnp.max(jnp.abs(out - ref)))
    assert jnp.allclose(out, ref, atol=2e-2, rtol=2e-2), max_err

    print("KERNEL_OK")
</pallas_src>

<mosaic_0001>
module attributes {stable_mosaic.version = 11 : i64} {
  func.func @_attn_conv4_kernel(%arg0: i32, %arg1: i32, %arg2: memref<1x4x64xbf16, #tpu.memory_space<vmem>>, %arg3: memref<1x4x64xbf16, #tpu.memory_space<vmem>>, %arg4: memref<8x4xbf16, #tpu.memory_space<vmem>>, %arg5: memref<8x1xf32, #tpu.memory_space<vmem>>, %arg6: memref<16x4xbf16, #tpu.memory_space<vmem>>, %arg7: memref<16x1xf32, #tpu.memory_space<vmem>>, %arg8: memref<4x8xbf16, #tpu.memory_space<vmem>>, %arg9: memref<4x1xf32, #tpu.memory_space<vmem>>, %arg10: memref<1x4x64xbf16, #tpu.memory_space<vmem>>, %arg11: memref<17x64xbf16, #tpu.memory_space<vmem>>) attributes {dimension_semantics = [#tpu.dimension_semantics<parallel>, #tpu.dimension_semantics<arbitrary>], iteration_bounds = array<i64: 2, 1>, scalar_prefetch = 0 : i64, scratch_operands = 1 : i64, tpu.core_type = #tpu.core_type<tc>, window_params = [{transform_indices = @transform_0, window_bounds = array<i64: 1, 4, 64>}, {transform_indices = @transform_1, window_bounds = array<i64: 1, 4, 64>}, {pipeline_mode = #tpu.pipeline_mode<synchronous>, transform_indices = @transform_2, window_bounds = array<i64: 8, 4>}, {pipeline_mode = #tpu.pipeline_mode<synchronous>, transform_indices = @transform_3, window_bounds = array<i64: 8, 1>}, {pipeline_mode = #tpu.pipeline_mode<synchronous>, transform_indices = @transform_4, window_bounds = array<i64: 16, 4>}, {pipeline_mode = #tpu.pipeline_mode<synchronous>, transform_indices = @transform_5, window_bounds = array<i64: 16, 1>}, {pipeline_mode = #tpu.pipeline_mode<synchronous>, transform_indices = @transform_6, window_bounds = array<i64: 4, 8>}, {pipeline_mode = #tpu.pipeline_mode<synchronous>, transform_indices = @transform_7, window_bounds = array<i64: 4, 1>}, {transform_indices = @transform_8, window_bounds = array<i64: 1, 4, 64>}]} {
    %c0_i32 = arith.constant 0 : i32
    %0 = arith.cmpi eq, %arg1, %c0_i32 : i32
    %1 = arith.extui %0 : i1 to i32
    %c0_i32_0 = arith.constant 0 : i32
    %2 = arith.cmpi ne, %1, %c0_i32_0 : i32
    scf.if %2 {
      %c0_21 = arith.constant 0 : index
      %c0_22 = arith.constant 0 : index
      %36 = vector.load %arg6[%c0_21, %c0_22] : memref<16x4xbf16, #tpu.memory_space<vmem>>, vector<16x4xbf16>
      %c0_23 = arith.constant 0 : index
      %c0_24 = arith.constant 0 : index
      %c0_25 = arith.constant 0 : index
      %37 = vector.load %arg3[%c0_23, %c0_24, %c0_25] : memref<1x4x64xbf16, #tpu.memory_space<vmem>>, vector<1x4x64xbf16>
      %38 = vector.shape_cast %37 : vector<1x4x64xbf16> to vector<4x64xbf16>
      %cst_26 = arith.constant dense<0.000000e+00> : vector<16x64xf32>
      %39 = tpu.matmul %36, %38, %cst_26 {dimension_numbers = #tpu.dot_dimension_numbers<[1], [0], [0], [1], [0, 0, 1, 1], [], []>} : vector<16x4xbf16>, vector<4x64xbf16>, vector<16x64xf32> -> vector<16x64xf32>
      %c0_27 = arith.constant 0 : index
      %c0_28 = arith.constant 0 : index
      %40 = vector.load %arg7[%c0_27, %c0_28] : memref<16x1xf32, #tpu.memory_space<vmem>>, vector<16x1xf32>
      %41 = vector.broadcast %40 : vector<16x1xf32> to vector<16x64xf32>
      %42 = arith.addf %39, %41 : vector<16x64xf32>
      %43 = arith.truncf %42 : vector<16x64xf32> to vector<16x64xbf16>
      %c0_29 = arith.constant 0 : index
      %c0_30 = arith.constant 0 : index
      %44 = vector.load %arg11[%c0_29, %c0_30] : memref<17x64xbf16, #tpu.memory_space<vmem>>, vector<16x64xbf16>
      tpu.vector_store %arg11[%c0_29, %c0_30], %43 {strides = array<i32>} : memref<17x64xbf16, #tpu.memory_space<vmem>>, vector<16x64xbf16>,
      %cst_31 = arith.constant 1.000000e+00 : bf16
      %45 = vector.broadcast %cst_31 : bf16 to vector<1x64xbf16>
      %c16 = arith.constant 16 : index
      %c0_32 = arith.constant 0 : index
      %46 = vector.load %arg11[%c16, %c0_32] : memref<17x64xbf16, #tpu.memory_space<vmem>>, vector<1x64xbf16>
      tpu.vector_store %arg11[%c16, %c0_32], %45 {strides = array<i32>} : memref<17x64xbf16, #tpu.memory_space<vmem>>, vector<1x64xbf16>,
    } else {
    }
    %c0 = arith.constant 0 : index
    %c0_1 = arith.constant 0 : index
    %3 = vector.load %arg4[%c0, %c0_1] : memref<8x4xbf16, #tpu.memory_space<vmem>>, vector<8x4xbf16>
    %c0_2 = arith.constant 0 : index
    %c0_3 = arith.constant 0 : index
    %c0_4 = arith.constant 0 : index
    %4 = vector.load %arg2[%c0_2, %c0_3, %c0_4] : memref<1x4x64xbf16, #tpu.memory_space<vmem>>, vector<1x4x64xbf16>
    %5 = vector.shape_cast %4 : vector<1x4x64xbf16> to vector<4x64xbf16>
    %cst = arith.constant dense<0.000000e+00> : vector<8x64xf32>
    %6 = tpu.matmul %3, %5, %cst {dimension_numbers = #tpu.dot_dimension_numbers<[1], [0], [0], [1], [0, 0, 1, 1], [], []>} : vector<8x4xbf16>, vector<4x64xbf16>, vector<8x64xf32> -> vector<8x64xf32>
    %c0_5 = arith.constant 0 : index
    %c0_6 = arith.constant 0 : index
    %7 = vector.load %arg5[%c0_5, %c0_6] : memref<8x1xf32, #tpu.memory_space<vmem>>, vector<8x1xf32>
    %8 = vector.broadcast %7 : vector<8x1xf32> to vector<8x64xf32>
    %9 = arith.addf %6, %8 : vector<8x64xf32>
    %c0_7 = arith.constant 0 : index
    %c0_8 = arith.constant 0 : index
    %10 = vector.load %arg11[%c0_7, %c0_8] : memref<17x64xbf16, #tpu.memory_space<vmem>>, vector<8x64xbf16>
    %11 = arith.truncf %9 : vector<8x64xf32> to vector<8x64xbf16>
    %cst_9 = arith.constant dense<0.000000e+00> : vector<64x64xf32>
    %12 = tpu.matmul %11, %10, %cst_9 {dimension_numbers = #tpu.dot_dimension_numbers<[0], [0], [1], [1], [0, 1, 1, 1], [], []>} : vector<8x64xbf16>, vector<8x64xbf16>, vector<64x64xf32> -> vector<64x64xf32>
    %cst_10 = arith.constant dense<0xFF800000> : vector<64xf32>
    %13 = vector.multi_reduction <maximumf>, %12, %cst_10 [1] : vector<64x64xf32> to vector<64xf32>
    %14 = vector.shape_cast %13 : vector<64xf32> to vector<64x1xf32>
    %15 = vector.broadcast %14 : vector<64x1xf32> to vector<64x64xf32>
    %16 = arith.subf %12, %15 : vector<64x64xf32>
    %17 = math.exp %16 : vector<64x64xf32>
    %18 = arith.truncf %17 : vector<64x64xf32> to vector<64x64xbf16>
    %c8 = arith.constant 8 : index
    %c0_11 = arith.constant 0 : index
    %19 = vector.load %arg11[%c8, %c0_11] : memref<17x64xbf16, #tpu.memory_space<vmem>>, vector<9x64xbf16>
    %cst_12 = arith.constant dense<0.000000e+00> : vector<9x64xf32>
    %20 = tpu.matmul %19, %18, %cst_12 {dimension_numbers = #tpu.dot_dimension_numbers<[1], [1], [0], [0], [0, 0, 1, 0], [], []>} : vector<9x64xbf16>, vector<64x64xbf16>, vector<9x64xf32> -> vector<9x64xf32>
    %21 = vector.extract_strided_slice %20 {offsets = [8, 0], sizes = [1, 64], strides = [1, 1]} : vector<9x64xf32> to vector<1x64xf32>
    %22 = tpu.reciprocal %21 {approx = true} : vector<1x64xf32> -> vector<1x64xf32>
    %23 = vector.extract_strided_slice %20 {offsets = [0, 0], sizes = [8, 64], strides = [1, 1]} : vector<9x64xf32> to vector<8x64xf32>
    %24 = vector.broadcast %22 : vector<1x64xf32> to vector<8x64xf32>
    %25 = arith.mulf %23, %24 : vector<8x64xf32>
    %c0_13 = arith.constant 0 : index
    %c0_14 = arith.constant 0 : index
    %26 = vector.load %arg8[%c0_13, %c0_14] : memref<4x8xbf16, #tpu.memory_space<vmem>>, vector<4x8xbf16>
    %27 = arith.truncf %25 : vector<8x64xf32> to vector<8x64xbf16>
    %cst_15 = arith.constant dense<0.000000e+00> : vector<4x64xf32>
    %28 = tpu.matmul %26, %27, %cst_15 {dimension_numbers = #tpu.dot_dimension_numbers<[1], [0], [0], [1], [0, 0, 1, 1], [], []>} : vector<4x8xbf16>, vector<8x64xbf16>, vector<4x64xf32> -> vector<4x64xf32>
    %c0_16 = arith.constant 0 : index
    %c0_17 = arith.constant 0 : index
    %29 = vector.load %arg9[%c0_16, %c0_17] : memref<4x1xf32, #tpu.memory_space<vmem>>, vector<4x1xf32>
    %30 = vector.broadcast %29 : vector<4x1xf32> to vector<4x64xf32>
    %31 = arith.addf %28, %30 : vector<4x64xf32>
    %32 = arith.truncf %31 : vector<4x64xf32> to vector<4x64xbf16>
    %c0_18 = arith.constant 0 : index
    %c0_19 = arith.constant 0 : index
    %c0_20 = arith.constant 0 : index
    %33 = vector.load %arg10[%c0_18, %c0_19, %c0_20] : memref<1x4x64xbf16, #tpu.memory_space<vmem>>, vector<1x4x64xbf16>
    %34 = vector.shape_cast %33 : vector<1x4x64xbf16> to vector<4x64xbf16>
    %35 = vector.shape_cast %32 : vector<4x64xbf16> to vector<1x4x64xbf16>
    tpu.vector_store %arg10[%c0_18, %c0_19, %c0_20], %35 {strides = array<i32>} : memref<1x4x64xbf16, #tpu.memory_space<vmem>>, vector<1x4x64xbf16>,
    return
  }
  func.func @transform_0(%arg0: i32, %arg1: i32) -> (i32, i32, i32) {
    %c0_i32 = arith.constant 0 : i32
    %c0_i32_0 = arith.constant 0 : i32
    return %arg0, %c0_i32, %arg1 : i32, i32, i32
  }
  func.func @transform_1(%arg0: i32, %arg1: i32) -> (i32, i32, i32) {
    %c0_i32 = arith.constant 0 : i32
    %c0_i32_0 = arith.constant 0 : i32
    %c0_i32_1 = arith.constant 0 : i32
    return %arg0, %c0_i32, %c0_i32_0 : i32, i32, i32
  }
  func.func @transform_2(%arg0: i32, %arg1: i32) -> (i32, i32) {
    %c0_i32 = arith.constant 0 : i32
    %c0_i32_0 = arith.constant 0 : i32
    %c0_i32_1 = arith.constant 0 : i32
    return %c0_i32, %c0_i32_0 : i32, i32
  }
  func.func @transform_3(%arg0: i32, %arg1: i32) -> (i32, i32) {
    %c0_i32 = arith.constant 0 : i32
    %c0_i32_0 = arith.constant 0 : i32
    %c0_i32_1 = arith.constant 0 : i32
    return %c0_i32, %c0_i32_0 : i32, i32
  }
  func.func @transform_4(%arg0: i32, %arg1: i32) -> (i32, i32) {
    %c0_i32 = arith.constant 0 : i32
    %c0_i32_0 = arith.constant 0 : i32
    %c0_i32_1 = arith.constant 0 : i32
    return %c0_i32, %c0_i32_0 : i32, i32
  }
  func.func @transform_5(%arg0: i32, %arg1: i32) -> (i32, i32) {
    %c0_i32 = arith.constant 0 : i32
    %c0_i32_0 = arith.constant 0 : i32
    %c0_i32_1 = arith.constant 0 : i32
    return %c0_i32, %c0_i32_0 : i32, i32
  }
  func.func @transform_6(%arg0: i32, %arg1: i32) -> (i32, i32) {
    %c0_i32 = arith.constant 0 : i32
    %c0_i32_0 = arith.constant 0 : i32
    %c0_i32_1 = arith.constant 0 : i32
    return %c0_i32, %c0_i32_0 : i32, i32
  }
  func.func @transform_7(%arg0: i32, %arg1: i32) -> (i32, i32) {
    %c0_i32 = arith.constant 0 : i32
    %c0_i32_0 = arith.constant 0 : i32
    %c0_i32_1 = arith.constant 0 : i32
    return %c0_i32, %c0_i32_0 : i32, i32
  }
  func.func @transform_8(%arg0: i32, %arg1: i32) -> (i32, i32, i32) {
    %c0_i32 = arith.constant 0 : i32
    %c0_i32_0 = arith.constant 0 : i32
    return %arg0, %c0_i32, %arg1 : i32, i32, i32
  }
}

module attributes {stable_mosaic.version = 11 : i64} {
  func.func @_upsample_act_residual_kernel(%arg0: i32, %arg1: i32, %arg2: memref<1x4x8x8xbf16, #tpu.memory_space<vmem>>, %arg3: memref<16x8xbf16, #tpu.memory_space<vmem>>, %arg4: memref<16x8xbf16, #tpu.memory_space<vmem>>, %arg5: memref<1x4x16x16xf32, #tpu.memory_space<vmem>>, %arg6: memref<1x4x16x16xf32, #tpu.memory_space<vmem>>) attributes {dimension_semantics = [#tpu.dimension_semantics<parallel>, #tpu.dimension_semantics<parallel>], iteration_bounds = array<i64: 2, 1>, scalar_prefetch = 0 : i64, scratch_operands = 0 : i64, tpu.core_type = #tpu.core_type<tc>, window_params = [{transform_indices = @transform_0, window_bounds = array<i64: 1, 4, 8, 8>}, {transform_indices = @transform_1, window_bounds = array<i64: 16, 8>}, {pipeline_mode = #tpu.pipeline_mode<synchronous>, transform_indices = @transform_2, window_bounds = array<i64: 16, 8>}, {transform_indices = @transform_3, window_bounds = array<i64: 1, 4, 16, 16>}, {transform_indices = @transform_4, window_bounds = array<i64: 1, 4, 16, 16>}]} {
    %c0 = arith.constant 0 : index
    %c0_0 = arith.constant 0 : index
    %0 = vector.load %arg3[%c0, %c0_0] : memref<16x8xbf16, #tpu.memory_space<vmem>>, vector<16x8xbf16>
    %c0_1 = arith.constant 0 : index
    %c0_2 = arith.constant 0 : index
    %1 = vector.load %arg4[%c0_1, %c0_2] : memref<16x8xbf16, #tpu.memory_space<vmem>>, vector<16x8xbf16>
    %c0_3 = arith.constant 0 : index
    %c0_4 = arith.constant 0 : index
    %c0_5 = arith.constant 0 : index
    %c0_6 = arith.constant 0 : index
    %2 = vector.load %arg2[%c0_3, %c0_4, %c0_5, %c0_6] : memref<1x4x8x8xbf16, #tpu.memory_space<vmem>>, vector<1x1x8x8xbf16>
    %3 = vector.shape_cast %2 : vector<1x1x8x8xbf16> to vector<8x8xbf16>
    %cst = arith.constant dense<0.000000e+00> : vector<16x8xf32>
    %4 = tpu.matmul %0, %3, %cst {dimension_numbers = #tpu.dot_dimension_numbers<[1], [0], [0], [1], [0, 0, 1, 1], [], []>} : vector<16x8xbf16>, vector<8x8xbf16>, vector<16x8xf32> -> vector<16x8xf32>
    %5 = arith.truncf %4 : vector<16x8xf32> to vector<16x8xbf16>
    %cst_7 = arith.constant dense<0.000000e+00> : vector<16x16xf32>
    %6 = tpu.matmul %5, %1, %cst_7 {dimension_numbers = #tpu.dot_dimension_numbers<[1], [1], [0], [0], [0, 0, 1, 0], [], []>} : vector<16x8xbf16>, vector<16x8xbf16>, vector<16x16xf32> -> vector<16x16xf32>
    %cst_8 = arith.constant 0.000000e+00 : f32
    %7 = vector.broadcast %cst_8 : f32 to vector<16x16xf32>
    %8 = arith.cmpf oge, %6, %7 : vector<16x16xf32>
    %cst_9 = arith.constant 2.000000e-01 : f32
    %9 = vector.broadcast %cst_9 : f32 to vector<16x16xf32>
    %10 = arith.mulf %9, %6 : vector<16x16xf32>
    %11 = arith.select %8, %6, %10 : vector<16x16xi1>, vector<16x16xf32>
    %c0_10 = arith.constant 0 : index
    %c0_11 = arith.constant 0 : index
    %c0_12 = arith.constant 0 : index
    %c0_13 = arith.constant 0 : index
    %12 = vector.load %arg5[%c0_10, %c0_11, %c0_12, %c0_13] : memref<1x4x16x16xf32, #tpu.memory_space<vmem>>, vector<1x1x16x16xf32>
    %13 = vector.shape_cast %12 : vector<1x1x16x16xf32> to vector<16x16xf32>
    %14 = arith.addf %13, %11 : vector<16x16xf32>
    %c0_14 = arith.constant 0 : index
    %c0_15 = arith.constant 0 : index
    %c0_16 = arith.constant 0 : index
    %c0_17 = arith.constant 0 : index
    %15 = vector.load %arg6[%c0_14, %c0_15, %c0_16, %c0_17] : memref<1x4x16x16xf32, #tpu.memory_space<vmem>>, vector<1x1x16x16xf32>
    %16 = vector.shape_cast %15 : vector<1x1x16x16xf32> to vector<16x16xf32>
    %17 = vector.shape_cast %14 : vector<16x16xf32> to vector<1x1x16x16xf32>
    tpu.vector_store %arg6[%c0_14, %c0_15, %c0_16, %c0_17], %17 {strides = array<i32>} : memref<1x4x16x16xf32, #tpu.memory_space<vmem>>, vector<1x1x16x16xf32>,
    %c0_18 = arith.constant 0 : index
    %c1 = arith.constant 1 : index
    %c0_19 = arith.constant 0 : index
    %c0_20 = arith.constant 0 : index
    %18 = vector.load %arg2[%c0_18, %c1, %c0_19, %c0_20] : memref<1x4x8x8xbf16, #tpu.memory_space<vmem>>, vector<1x1x8x8xbf16>
    %19 = vector.shape_cast %18 : vector<1x1x8x8xbf16> to vector<8x8xbf16>
    %cst_21 = arith.constant dense<0.000000e+00> : vector<16x8xf32>
    %20 = tpu.matmul %0, %19, %cst_21 {dimension_numbers = #tpu.dot_dimension_numbers<[1], [0], [0], [1], [0, 0, 1, 1], [], []>} : vector<16x8xbf16>, vector<8x8xbf16>, vector<16x8xf32> -> vector<16x8xf32>
    %21 = arith.truncf %20 : vector<16x8xf32> to vector<16x8xbf16>
    %cst_22 = arith.constant dense<0.000000e+00> : vector<16x16xf32>
    %22 = tpu.matmul %21, %1, %cst_22 {dimension_numbers = #tpu.dot_dimension_numbers<[1], [1], [0], [0], [0, 0, 1, 0], [], []>} : vector<16x8xbf16>, vector<16x8xbf16>, vector<16x16xf32> -> vector<16x16xf32>
    %cst_23 = arith.constant 0.000000e+00 : f32
    %23 = vector.broadcast %cst_23 : f32 to vector<16x16xf32>
    %24 = arith.cmpf oge, %22, %23 : vector<16x16xf32>
    %cst_24 = arith.constant 2.000000e-01 : f32
    %25 = vector.broadcast %cst_24 : f32 to vector<16x16xf32>
    %26 = arith.mulf %25, %22 : vector<16x16xf32>
    %27 = arith.select %24, %22, %26 : vector<16x16xi1>, vector<16x16xf32>
    %c0_25 = arith.constant 0 : index
    %c1_26 = arith.constant 1 : index
    %c0_27 = arith.constant 0 : index
    %c0_28 = arith.constant 0 : index
    %28 = vector.load %arg5[%c0_25, %c1_26, %c0_27, %c0_28] : memref<1x4x16x16xf32, #tpu.memory_space<vmem>>, vector<1x1x16x16xf32>
    %29 = vector.shape_cast %28 : vector<1x1x16x16xf32> to vector<16x16xf32>
    %30 = arith.addf %29, %27 : vector<16x16xf32>
    %c0_29 = arith.constant 0 : index
    %c1_30 = arith.constant 1 : index
    %c0_31 = arith.constant 0 : index
    %c0_32 = arith.constant 0 : index
    %31 = vector.load %arg6[%c0_29, %c1_30, %c0_31, %c0_32] : memref<1x4x16x16xf32, #tpu.memory_space<vmem>>, vector<1x1x16x16xf32>
    %32 = vector.shape_cast %31 : vector<1x1x16x16xf32> to vector<16x16xf32>
    %33 = vector.shape_cast %30 : vector<16x16xf32> to vector<1x1x16x16xf32>
    tpu.vector_store %arg6[%c0_29, %c1_30, %c0_31, %c0_32], %33 {strides = array<i32>} : memref<1x4x16x16xf32, #tpu.memory_space<vmem>>, vector<1x1x16x16xf32>,
    %c0_33 = arith.constant 0 : index
    %c2 = arith.constant 2 : index
    %c0_34 = arith.constant 0 : index
    %c0_35 = arith.constant 0 : index
    %34 = vector.load %arg2[%c0_33, %c2, %c0_34, %c0_35] : memref<1x4x8x8xbf16, #tpu.memory_space<vmem>>, vector<1x1x8x8xbf16>
    %35 = vector.shape_cast %34 : vector<1x1x8x8xbf16> to vector<8x8xbf16>
    %cst_36 = arith.constant dense<0.000000e+00> : vector<16x8xf32>
    %36 = tpu.matmul %0, %35, %cst_36 {dimension_numbers = #tpu.dot_dimension_numbers<[1], [0], [0], [1], [0, 0, 1, 1], [], []>} : vector<16x8xbf16>, vector<8x8xbf16>, vector<16x8xf32> -> vector<16x8xf32>
    %37 = arith.truncf %36 : vector<16x8xf32> to vector<16x8xbf16>
    %cst_37 = arith.constant dense<0.000000e+00> : vector<16x16xf32>
    %38 = tpu.matmul %37, %1, %cst_37 {dimension_numbers = #tpu.dot_dimension_numbers<[1], [1], [0], [0], [0, 0, 1, 0], [], []>} : vector<16x8xbf16>, vector<16x8xbf16>, vector<16x16xf32> -> vector<16x16xf32>
    %cst_38 = arith.constant 0.000000e+00 : f32
    %39 = vector.broadcast %cst_38 : f32 to vector<16x16xf32>
    %40 = arith.cmpf oge, %38, %39 : vector<16x16xf32>
    %cst_39 = arith.constant 2.000000e-01 : f32
    %41 = vector.broadcast %cst_39 : f32 to vector<16x16xf32>
    %42 = arith.mulf %41, %38 : vector<16x16xf32>
    %43 = arith.select %40, %38, %42 : vector<16x16xi1>, vector<16x16xf32>
    %c0_40 = arith.constant 0 : index
    %c2_41 = arith.constant 2 : index
    %c0_42 = arith.constant 0 : index
    %c0_43 = arith.constant 0 : index
    %44 = vector.load %arg5[%c0_40, %c2_41, %c0_42, %c0_43] : memref<1x4x16x16xf32, #tpu.memory_space<vmem>>, vector<1x1x16x16xf32>
    %45 = vector.shape_cast %44 : vector<1x1x16x16xf32> to vector<16x16xf32>
    %46 = arith.addf %45, %43 : vector<16x16xf32>
    %c0_44 = arith.constant 0 : index
    %c2_45 = arith.constant 2 : index
    %c0_46 = arith.constant 0 : index
    %c0_47 = arith.constant 0 : index
    %47 = vector.load %arg6[%c0_44, %c2_45, %c0_46, %c0_47] : memref<1x4x16x16xf32, #tpu.memory_space<vmem>>, vector<1x1x16x16xf32>
    %48 = vector.shape_cast %47 : vector<1x1x16x16xf32> to vector<16x16xf32>
    %49 = vector.shape_cast %46 : vector<16x16xf32> to vector<1x1x16x16xf32>
    tpu.vector_store %arg6[%c0_44, %c2_45, %c0_46, %c0_47], %49 {strides = array<i32>} : memref<1x4x16x16xf32, #tpu.memory_space<vmem>>, vector<1x1x16x16xf32>,
    %c0_48 = arith.constant 0 : index
    %c3 = arith.constant 3 : index
    %c0_49 = arith.constant 0 : index
    %c0_50 = arith.constant 0 : index
    %50 = vector.load %arg2[%c0_48, %c3, %c0_49, %c0_50] : memref<1x4x8x8xbf16, #tpu.memory_space<vmem>>, vector<1x1x8x8xbf16>
    %51 = vector.shape_cast %50 : vector<1x1x8x8xbf16> to vector<8x8xbf16>
    %cst_51 = arith.constant dense<0.000000e+00> : vector<16x8xf32>
    %52 = tpu.matmul %0, %51, %cst_51 {dimension_numbers = #tpu.dot_dimension_numbers<[1], [0], [0], [1], [0, 0, 1, 1], [], []>} : vector<16x8xbf16>, vector<8x8xbf16>, vector<16x8xf32> -> vector<16x8xf32>
    %53 = arith.truncf %52 : vector<16x8xf32> to vector<16x8xbf16>
    %cst_52 = arith.constant dense<0.000000e+00> : vector<16x16xf32>
    %54 = tpu.matmul %53, %1, %cst_52 {dimension_numbers = #tpu.dot_dimension_numbers<[1], [1], [0], [0], [0, 0, 1, 0], [], []>} : vector<16x8xbf16>, vector<16x8xbf16>, vector<16x16xf32> -> vector<16x16xf32>
    %cst_53 = arith.constant 0.000000e+00 : f32
    %55 = vector.broadcast %cst_53 : f32 to vector<16x16xf32>
    %56 = arith.cmpf oge, %54, %55 : vector<16x16xf32>
    %cst_54 = arith.constant 2.000000e-01 : f32
    %57 = vector.broadcast %cst_54 : f32 to vector<16x16xf32>
    %58 = arith.mulf %57, %54 : vector<16x16xf32>
    %59 = arith.select %56, %54, %58 : vector<16x16xi1>, vector<16x16xf32>
    %c0_55 = arith.constant 0 : index
    %c3_56 = arith.constant 3 : index
    %c0_57 = arith.constant 0 : index
    %c0_58 = arith.constant 0 : index
    %60 = vector.load %arg5[%c0_55, %c3_56, %c0_57, %c0_58] : memref<1x4x16x16xf32, #tpu.memory_space<vmem>>, vector<1x1x16x16xf32>
    %61 = vector.shape_cast %60 : vector<1x1x16x16xf32> to vector<16x16xf32>
    %62 = arith.addf %61, %59 : vector<16x16xf32>
    %c0_59 = arith.constant 0 : index
    %c3_60 = arith.constant 3 : index
    %c0_61 = arith.constant 0 : index
    %c0_62 = arith.constant 0 : index
    %63 = vector.load %arg6[%c0_59, %c3_60, %c0_61, %c0_62] : memref<1x4x16x16xf32, #tpu.memory_space<vmem>>, vector<1x1x16x16xf32>
    %64 = vector.shape_cast %63 : vector<1x1x16x16xf32> to vector<16x16xf32>
    %65 = vector.shape_cast %62 : vector<16x16xf32> to vector<1x1x16x16xf32>
    tpu.vector_store %arg6[%c0_59, %c3_60, %c0_61, %c0_62], %65 {strides = array<i32>} : memref<1x4x16x16xf32, #tpu.memory_space<vmem>>, vector<1x1x16x16xf32>,
    return
  }
  func.func @transform_0(%arg0: i32, %arg1: i32) -> (i32, i32, i32, i32) {
    %c0_i32 = arith.constant 0 : i32
    %c0_i32_0 = arith.constant 0 : i32
    %c0_i32_1 = arith.constant 0 : i32
    %c0_i32_2 = arith.constant 0 : i32
    return %arg0, %c0_i32, %c0_i32_0, %c0_i32_1 : i32, i32, i32, i32
  }
  func.func @transform_1(%arg0: i32, %arg1: i32) -> (i32, i32) {
    %c0_i32 = arith.constant 0 : i32
    %c0_i32_0 = arith.constant 0 : i32
    return %arg1, %c0_i32 : i32, i32
  }
  func.func @transform_2(%arg0: i32, %arg1: i32) -> (i32, i32) {
    %c0_i32 = arith.constant 0 : i32
    %c0_i32_0 = arith.constant 0 : i32
    %c0_i32_1 = arith.constant 0 : i32
    return %c0_i32, %c0_i32_0 : i32, i32
  }
  func.func @transform_3(%arg0: i32, %arg1: i32) -> (i32, i32, i32, i32) {
    %c0_i32 = arith.constant 0 : i32
    %c0_i32_0 = arith.constant 0 : i32
    %c0_i32_1 = arith.constant 0 : i32
    return %arg0, %c0_i32, %arg1, %c0_i32_0 : i32, i32, i32, i32
  }
  func.func @transform_4(%arg0: i32, %arg1: i32) -> (i32, i32, i32, i32) {
    %c0_i32 = arith.constant 0 : i32
    %c0_i32_0 = arith.constant 0 : i32
    %c0_i32_1 = arith.constant 0 : i32
    return %arg0, %c0_i32, %arg1, %c0_i32_0 : i32, i32, i32, i32
  }
}

</mosaic_0001>

<llo_original>
// kernel: cma_block_forward.3
$region0: #{cma_block_forward.3}
  #allocation0 [shape = 'u32[]', space=smem, size = 0x4, offset = 0x4, fixed_abs, tag = 'smem constant byte address 0x4 - core index']
  #allocation1 [shape = 'u32[72,128]{1,0:T(1,128)}', space=vmem, size = 0x9000, scoped, tag = 'internal scratch']
  %s0 = inlined_call_operand.vmem [shape: bf16[2,4,8,8], index: 0, kind: input, shape index: {}]
  %s1 = inlined_call_operand.vmem [shape: bf16[16,8], index: 1, kind: input, shape index: {}, may-alias: {1,2}]
  %s2 = inlined_call_operand.vmem [shape: bf16[16,8], index: 2, kind: input, shape index: {}, may-alias: {1,2}]
  %s3 = inlined_call_operand.vmem [shape: f32[2,4,16,16], index: 3, kind: input, shape index: {}]
  %s4 = inlined_call_operand.hbm [shape: f32[2,4,16,16], index: 4, kind: output, shape index: {}]
  %s5 = sld [smem:[#allocation0]]
  $region49: #{cma_block_forward.3} parent=0
    _
  %s7 = ssub.s32 1, %s5
  %s8 = scalar_select 0, %s7, %s5
  $region1: #{cma_block_forward.3} parent=0
    #allocation2 [shape = 'u8[65536]{0}', space=vmem, size = 0x10000, scoped, tag = 'output window, operand 0']
    #allocation3 [shape = 's32[2]{0}', space=sflag, size = 0x8, scoped, tag = 'scoped memory for cma_block_forward.3']
    %9 = vsyncpa [#allocation3], 0
    %s10 = scalar_lea.sflag [#allocation3], 1
    %11 = vsyncpa %s10, 0
    loop: start=0, step=1, limit=4
    $region2: #{cma_block_forward.3} parent=1 // loop_pre_header
      _
    $region3: #{cma_block_forward.3} parent=1 // loop_header
      %s13 = sphi 0, %s17
      %p14 = scmp.ge.s32.totalorder %s13, 4
      %s20 = sphi 0, %s32
      %s21 = sphi 0, %s28
      %s22 = sphi 0, %s20
      %s23 = sphi 0, %s21
      %s24 = sphi 0, %s22
      %s25 = sphi 0, %s23
      %s35 = sphi 0, %s37
      %s38 = sphi 0, %s35
      %s39 = sphi 0, %s38
      %s55 = sphi 0, %s39
      %s61 = sphi 0, %s63
      %s64 = sphi 0, %s61
      %s65 = sphi 0, %s64
      %s81 = sphi 0, %s65
      %s85 = sphi 0, %s85
      %s87 = sphi 0, %s85
      %s88 = sphi 0, %s87
      %s102 = sphi 0, %s88
      %s110 = sphi 0, %s112
      %s113 = sphi 0, %s110
      %s114 = sphi 0, %s113
      %s130 = sphi 0, %s114
      %s138 = sphi 0, %s140
      %s141 = sphi 0, %s138
      %s142 = sphi 0, %s141
      %s158 = sphi 0, %s142
    $region4: #{cma_block_forward.3} parent=1 // loop_header_branch
      %16 = sbr.rel (%p14) target = $region8
    $region5: #{cma_block_forward.3} parent=1 // loop_body
      %s18 = ssub.s32 %s13, 1
      %s19 = ssub.s32 %s13, 2
      %s26 = sadd.s32 1, %s21
      %p27 = scmp.ge.s32.totalorder %s26, 1
      %s28 = scalar_select %p27, 0, %s26
      %s29 = sadd.s32 1, %s20
      %s30 = scalar_select %p27, %s29, %s20
      %p31 = scmp.ge.s32.totalorder %s30, 2
      %s32 = scalar_select %p31, 0, %s30
      %s33 = ssub.s32 %s20, %s32
      %p34 = scmp.eq.s32.totalorder %s33, 0
      %s36 = sadd.s32 %s35, 1
      %s37 = scalar_select %p34, %s35, %s36
      %p40 = pneg %p34
      %p41 = scmp.eq.s32.totalorder %s13, 1
      %p42 = por %p40, %p41
      %p43 = scmp.ne.s32.totalorder %s35, %s38
      %p44 = scmp.eq.s32.totalorder %s13, 0
      %p45 = por %p43, %p44
      %p46 = scmp.ne.s32.totalorder %s35, %s38
      %p47 = scmp.eq.s32.totalorder %s18, 1
      %p48 = por %p46, %p47
      %p49 = scmp.ne.s32.totalorder %s38, %s39
      %p50 = scmp.eq.s32.totalorder %s18, 0
      %p51 = por %p49, %p50
      %p52 = scmp.ne.s32.totalorder %s38, %s39
      %p53 = scmp.eq.s32.totalorder %s19, 1
      %p54 = por %p52, %p53
      %p56 = scmp.ne.s32.totalorder %s39, %s55
      %p57 = scmp.eq.s32.totalorder %s19, 0
      %p58 = por %p56, %p57
      %s59 = ssub.s32 %s21, %s28
      %p60 = scmp.eq.s32.totalorder %s59, 0
      %s62 = sadd.s32 %s61, 1
      %s63 = scalar_select %p60, %s61, %s62
      %p66 = pneg %p60
      %p67 = scmp.eq.s32.totalorder %s13, 1
      %p68 = por %p66, %p67
      %p69 = scmp.ne.s32.totalorder %s61, %s64
      %p70 = scmp.eq.s32.totalorder %s13, 0
      %p71 = por %p69, %p70
      %p72 = scmp.ne.s32.totalorder %s61, %s64
      %p73 = scmp.eq.s32.totalorder %s18, 1
      %p74 = por %p72, %p73
      %p75 = scmp.ne.s32.totalorder %s64, %s65
      %p76 = scmp.eq.s32.totalorder %s18, 0
      %p77 = por %p75, %p76
      %p78 = scmp.ne.s32.totalorder %s64, %s65
      %p79 = scmp.eq.s32.totalorder %s19, 1
      %p80 = por %p78, %p79
      %p82 = scmp.ne.s32.totalorder %s65, %s81
      %p83 = scmp.eq.s32.totalorder %s19, 0
      %p84 = por %p82, %p83
      %s86 = sadd.s32 %s85, 1
      %p89 = scmp.eq.s32.totalorder %s13, 1
      %p90 = scmp.ne.s32.totalorder %s85, %s87
      %p91 = scmp.eq.s32.totalorder %s13, 0
      %p92 = por %p90, %p91
      %p93 = scmp.ne.s32.totalorder %s85, %s87
      %p94 = scmp.eq.s32.totalorder %s18, 1
      %p95 = por %p93, %p94
      %p96 = scmp.ne.s32.totalorder %s87, %s88
      %p97 = scmp.eq.s32.totalorder %s18, 0
      %p98 = por %p96, %p97
      %p99 = scmp.ne.s32.totalorder %s87, %s88
      %p100 = scmp.eq.s32.totalorder %s19, 1
      %p101 = por %p99, %p100
      %p103 = scmp.ne.s32.totalorder %s88, %s102
      %p104 = scmp.eq.s32.totalorder %s19, 0
      %p105 = por %p103, %p104
      %s106 = ssub.s32 %s20, %s32
      %s107 = ssub.s32 %s21, %s28
      %s108 = sor.u32 %s106, %s107
      %p109 = scmp.eq.s32.totalorder %s108, 0
      %s111 = sadd.s32 %s110, 1
      %s112 = scalar_select %p109, %s110, %s111
      %p115 = pneg %p109
      %p116 = scmp.eq.s32.totalorder %s13, 1
      %p117 = por %p115, %p116
      %p118 = scmp.ne.s32.totalorder %s110, %s113
      %p119 = scmp.eq.s32.totalorder %s13, 0
      %p120 = por %p118, %p119
      %p121 = scmp.ne.s32.totalorder %s110, %s113
      %p122 = scmp.eq.s32.totalorder %s18, 1
      %p123 = por %p121, %p122
      %p124 = scmp.ne.s32.totalorder %s113, %s114
      %p125 = scmp.eq.s32.totalorder %s18, 0
      %p126 = por %p124, %p125
      %p127 = scmp.ne.s32.totalorder %s113, %s114
      %p128 = scmp.eq.s32.totalorder %s19, 1
      %p129 = por %p127, %p128
      %p131 = scmp.ne.s32.totalorder %s114, %s130
      %p132 = scmp.eq.s32.totalorder %s19, 0
      %p133 = por %p131, %p132
      %s134 = ssub.s32 %s20, %s32
      %s135 = ssub.s32 %s21, %s28
      %s136 = sor.u32 %s134, %s135
      %p137 = scmp.eq.s32.totalorder %s136, 0
      %s139 = sadd.s32 %s138, 1
      %s140 = scalar_select %p137, %s138, %s139
      %p143 = pneg %p137
      %p144 = scmp.eq.s32.totalorder %s13, 1
      %p145 = por %p143, %p144
      %p146 = scmp.ne.s32.totalorder %s138, %s141
      %p147 = scmp.eq.s32.totalorder %s13, 0
      %p148 = por %p146, %p147
      %p149 = scmp.ne.s32.totalorder %s138, %s141
      %p150 = scmp.eq.s32.totalorder %s18, 1
      %p151 = por %p149, %p150
      %p152 = scmp.ne.s32.totalorder %s141, %s142
      %p153 = scmp.eq.s32.totalorder %s18, 0
      %p154 = por %p152, %p153
      %p155 = scmp.ne.s32.totalorder %s141, %s142
      %p156 = scmp.eq.s32.totalorder %s19, 1
      %p157 = por %p155, %p156
      %p159 = scmp.ne.s32.totalorder %s142, %s158
      %p160 = scmp.eq.s32.totalorder %s19, 0
      %p161 = por %p159, %p160
      %p162 = scmp.le.s32.totalorder 1, %s13
      %p163 = scmp.lt.s32.totalorder %s13, 3
      %p164 = pnand %p162, %p163
      %p165 = pneg %p164
      // Predicated region
      $region9: #{cma_block_forward.3} parent=5 // pred_check
        _
      $region10: #{cma_block_forward.3} parent=5 // pred_check_branch
        %167 = sbr.rel (%p164) target = $region12
      $region11: #{cma_block_forward.3} parent=5 // pred_region
        %s168 = ssub.s32 %s13, 1
        // Predicated region
        $region13: #{cma_block_forward.3} parent=11 // pred_check
          %p169 = pneg %p77
        $region14: #{cma_block_forward.3} parent=11 // pred_check_branch
          %171 = sbr.rel (%p169) target = $region16
        $region15: #{cma_block_forward.3} parent=11 // pred_region
          %s172 = smul.u32 2, %s23
          %p173 = scmp.lt.s32.totalorder %s172, 1
          %s174 = scalar_select %p173, %s172, 1
          %s175 = smul.addr %s174, 4
          %s176 = scalar_lea.vmem %s1, %s175
          %s177 = smul.u32 2, %s23
        $region16: #{cma_block_forward.3} parent=11 // pred_fallthru
          _
        // Predicated region
        $region17: #{cma_block_forward.3} parent=11 // pred_check
          %p178 = pneg %p98
        $region18: #{cma_block_forward.3} parent=11 // pred_check_branch
          %180 = sbr.rel (%p178) target = $region20
        $region19: #{cma_block_forward.3} parent=11 // pred_region
          _
        $region20: #{cma_block_forward.3} parent=11 // pred_fallthru
          _
      $region12: #{cma_block_forward.3} parent=5 // pred_fallthru
        _
      %p181 = scmp.lt.s32.totalorder %s13, 2
      // Predicated region
      $region21: #{cma_block_forward.3} parent=5 // pred_check
        %p182 = pneg %p181
      $region22: #{cma_block_forward.3} parent=5 // pred_check_branch
        %184 = sbr.rel (%p182) target = $region24
      $region23: #{cma_block_forward.3} parent=5 // pred_region
        // Predicated region
        $region25: #{cma_block_forward.3} parent=23 // pred_check
          %p185 = pneg %p45
        $region26: #{cma_block_forward.3} parent=23 // pred_check_branch
          %187 = sbr.rel (%p185) target = $region28
        $region27: #{cma_block_forward.3} parent=23 // pred_region
          %p188 = scmp.lt.s32.totalorder %s20, 1
          %s189 = scalar_select %p188, %s20, 1
          %s190 = smul.addr %s189, 4
          %s191 = smul.addr %s190, 4
          %s192 = scalar_lea.vmem %s0, %s191
        $region28: #{cma_block_forward.3} parent=23 // pred_fallthru
          _
        // Predicated region
        $region29: #{cma_block_forward.3} parent=23 // pred_check
          %p193 = pneg %p120
        $region30: #{cma_block_forward.3} parent=23 // pred_check_branch
          %195 = sbr.rel (%p193) target = $region32
        $region31: #{cma_block_forward.3} parent=23 // pred_region
          %s196 = smul.u32 2, %s21
          %p197 = scmp.lt.s32.totalorder %s20, 1
          %s198 = scalar_select %p197, %s20, 1
          %p199 = scmp.lt.s32.totalorder %s196, 1
          %s200 = scalar_select %p199, %s196, 1
          %s201 = smul.addr %s198, 8
          %s202 = sadd.s32 %s200, %s201
          %s203 = smul.addr %s202, 8
          %s204 = scalar_lea.vmem %s3, %s203
          %s205 = smul.u32 2, %s21
        $region32: #{cma_block_forward.3} parent=23 // pred_fallthru
          _
      $region24: #{cma_block_forward.3} parent=5 // pred_fallthru
        _
      %p206 = scmp.le.s32.totalorder 1, %s13
      %p207 = scmp.lt.s32.totalorder %s13, 3
      %p208 = pnand %p206, %p207
      %p209 = pneg %p208
      // Predicated region
      $region33: #{cma_block_forward.3} parent=5 // pred_check
        _
      $region34: #{cma_block_forward.3} parent=5 // pred_check_branch
        %211 = sbr.rel (%p208) target = $region36
      $region35: #{cma_block_forward.3} parent=5 // pred_region
        %s212 = ssub.s32 %s13, 1
        %p213 = scmp.lt.s32.totalorder %s22, 1
        %s214 = scalar_select %p213, %s22, 1
        %s215 = smul.addr %s214, 4
        %s216 = smul.addr %s215, 4
        %s217 = scalar_lea.vmem %s0, %s216
        %p218 = pneg %p51
        %p219 = pneg %p48
        %s220 = smul.u32 2, %s23
        %p221 = scmp.lt.s32.totalorder %s220, 1
        %s222 = scalar_select %p221, %s220, 1
        %s223 = smul.addr %s222, 4
        %s224 = scalar_lea.vmem %s1, %s223
        %p225 = pneg %p77
        %p226 = pneg %p74
        %p227 = pneg %p98
        %p228 = pneg %p95
        %s229 = smul.u32 2, %s23
        %p230 = scmp.lt.s32.totalorder %s22, 1
        %s231 = scalar_select %p230, %s22, 1
        %p232 = scmp.lt.s32.totalorder %s229, 1
        %s233 = scalar_select %p232, %s229, 1
        %s234 = smul.addr %s231, 8
        %s235 = sadd.s32 %s233, %s234
        %s236 = smul.addr %s235, 8
        %s237 = scalar_lea.vmem %s3, %s236
        %p238 = pneg %p126
        %p239 = pneg %p123
        %p240 = pneg %p154
        %p241 = pneg %p151
        %s242 = sand.u32 %s141, 1
        %s243 = scalar_lea.sflag [#allocation3], %s242
        %s244 = sand.u32 %s141, 1
        %s245 = smul.addr %s244, 64
        %s246 = scalar_lea.vmem [#allocation2], %s245
        %p247 = scmp.lt.s32.totalorder %s22, 1
        %s248 = scalar_select %p247, %s22, 1
        %s249 = smul.addr %s248, 4
        %s250 = smul.addr %s249, 4
        %s251 = scalar_lea.vmem %s0, %s250
        %s252 = smul.u32 2, %s23
        %p253 = scmp.lt.s32.totalorder %s252, 1
        %s254 = scalar_select %p253, %s252, 1
        %s255 = smul.addr %s254, 4
        %s256 = scalar_lea.vmem %s1, %s255
        %s257 = smul.u32 2, %s23
        %s258 = smul.u32 2, %s23
        %p259 = scmp.lt.s32.totalorder %s22, 1
        %s260 = scalar_select %p259, %s22, 1
        %p261 = scmp.lt.s32.totalorder %s258, 1
        %s262 = scalar_select %p261, %s258, 1
        %s263 = smul.addr %s260, 8
        %s264 = sadd.s32 %s262, %s263
        %s265 = smul.addr %s264, 8
        %s266 = scalar_lea.vmem %s3, %s265
        %s267 = smul.u32 2, %s23
        %s268 = smul.u32 2, %s23
        %v270 = vld [vmem:[%s256] sm:$0xf]
        %v271 = vld [vmem:[%s256 + $0x4] sm:$0xf]
        %v272 = vld [vmem:[%s2] sm:$0xf]
        %v273 = vld [vmem:[%s2 + $0x4] sm:$0xf]
        %v274 = vld [vmem:[%s251] sm:$0xf]
        %v277 = vunpack.c.l.b16 %v270
        %v278 = vunpack.c.l.b16 %v271
        %v279 = vpack.c.b16 %v278, %v277
        %vm280 = vcmask 64512
        %v282 = vsel %vm280, %v279, 0
        %vm284 = vcmask 1043456
        %v286 = vsel %vm284, %v274, 0
        %288 = vmatpush.bf16.msra.mxu0 0
        %289 = vmatpush.bf16.msra.mxu0 0
        %290 = vmatpush.bf16.msra.mxu0 0
        %291 = vmatpush.bf16.msra.mxu0 0
        %292 = vmatpush.bf16.msra.mxu0 0
        %293 = vmatpush.bf16.msra.mxu0 0
        %294 = vmatpush.bf16.msra.mxu0 0
        %295 = vmatpush.bf16.msra.mxu0 %v286
        %296 = vmatmul.bf16.gmra.mxu0 %v282
        %v297 = vpop.f32.mrf.mxu0
        %v298 = vadd.f32 0.0, %v297
        %v299 = vpop.f32.mrf.mxu0
        %v300 = vadd.f32 0.0, %v299
        %301 = vdwg.mxu0
        %v302 = vpack.c.bf16 %v300, %v298
        %v305 = vunpack.c.l.b16 %v272
        %v306 = vunpack.c.l.b16 %v273
        %v307 = vpack.c.b16 %v306, %v305
        %v309 = vsel %vm280, %v302, 0
        %v312 = vsel %vm280, %v307, 0
        %314 = vmatpush.bf16.xpose.msra.mxu0 0
        %315 = vmatpush.bf16.xpose.msra.mxu0 0
        %316 = vmatpush.bf16.xpose.msra.mxu0 0
        %317 = vmatpush.bf16.xpose.msra.mxu0 0
        %318 = vmatpush.bf16.xpose.msra.mxu0 0
        %319 = vmatpush.bf16.xpose.msra.mxu0 0
        %320 = vmatpush.bf16.xpose.msra.mxu0 0
        %321 = vmatpush.bf16.xpose.msra.mxu0 %v312
        %322 = vmatmul.bf16.gmra.mxu0 %v309
        %v323 = vpop.f32.mrf.mxu0
        %v324 = vadd.f32 0.0, %v323
        %v325 = vpop.f32.mrf.mxu0
        %v326 = vadd.f32 0.0, %v325
        %327 = vdwg.mxu0
        %vm328 = vcmp.ge.f32.partialorder %v324, 0.0
        %vm329 = vcmp.ge.f32.partialorder %v326, 0.0
        %v330 = vmul.f32 %v324, 0.2
        %v331 = vmul.f32 %v326, 0.2
        %v332 = vsel %vm328, %v324, %v330
        %v333 = vsel %vm329, %v326, %v331
        %v334 = vld [vmem:[%s266] sm:$0xff]
        %v335 = vld [vmem:[%s266 + $0x8] sm:$0xff]
        %v336 = vadd.f32 %v334, %v332
        %v337 = vadd.f32 %v335, %v333
        %vm338 = vcmask 130048
        %339 = vst.msk [vmem:[%s246] sm:$0xff] %vm338, %v336
        %340 = vst.msk [vmem:[%s246 + $0x8] sm:$0xff] %vm338, %v337
        %s341 = scalar_lea.vmem %s251, 4
        %v342 = vld [vmem:[%s341] sm:$0xf]
        %v344 = vsel %vm284, %v342, 0
        %346 = vmatpush.bf16.msra.mxu0 0
        %347 = vmatpush.bf16.msra.mxu0 0
        %348 = vmatpush.bf16.msra.mxu0 0
        %349 = vmatpush.bf16.msra.mxu0 0
        %350 = vmatpush.bf16.msra.mxu0 0
        %351 = vmatpush.bf16.msra.mxu0 0
        %352 = vmatpush.bf16.msra.mxu0 0
        %353 = vmatpush.bf16.msra.mxu0 %v344
        %354 = vmatmul.bf16.gmra.mxu0 %v282
        %v355 = vpop.f32.mrf.mxu0
        %v356 = vadd.f32 0.0, %v355
        %v357 = vpop.f32.mrf.mxu0
        %v358 = vadd.f32 0.0, %v357
        %359 = vdwg.mxu0
        %v360 = vpack.c.bf16 %v358, %v356
        %v362 = vsel %vm280, %v360, 0
        %364 = vmatpush.bf16.xpose.msra.mxu0 0
        %365 = vmatpush.bf16.xpose.msra.mxu0 0
        %366 = vmatpush.bf16.xpose.msra.mxu0 0
        %367 = vmatpush.bf16.xpose.msra.mxu0 0
        %368 = vmatpush.bf16.xpose.msra.mxu0 0
        %369 = vmatpush.bf16.xpose.msra.mxu0 0
        %370 = vmatpush.bf16.xpose.msra.mxu0 0
        %371 = vmatpush.bf16.xpose.msra.mxu0 %v312
        %372 = vmatmul.bf16.gmra.mxu0 %v362
        %v373 = vpop.f32.mrf.mxu0
        %v374 = vadd.f32 0.0, %v373
        %v375 = vpop.f32.mrf.mxu0
        %v376 = vadd.f32 0.0, %v375
        %377 = vdwg.mxu0
        %vm378 = vcmp.ge.f32.partialorder %v374, 0.0
        %vm379 = vcmp.ge.f32.partialorder %v376, 0.0
        %v380 = vmul.f32 %v374, 0.2
        %v381 = vmul.f32 %v376, 0.2
        %v382 = vsel %vm378, %v374, %v380
        %v383 = vsel %vm379, %v376, %v381
        %s384 = scalar_lea.vmem %s266, 16
        %v385 = vld [vmem:[%s384] sm:$0xff]
        %v386 = vld [vmem:[%s384 + $0x8] sm:$0xff]
        %v387 = vadd.f32 %v385, %v382
        %v388 = vadd.f32 %v386, %v383
        %s389 = scalar_lea.vmem %s246, 16 [#allocation2]
        %390 = vst.msk [vmem:[%s389] sm:$0xff] %vm338, %v387
        %391 = vst.msk [vmem:[%s389 + $0x8] sm:$0xff] %vm338, %v388
        %s392 = scalar_lea.vmem %s251, 8
        %v393 = vld [vmem:[%s392] sm:$0xf]
        %v395 = vsel %vm284, %v393, 0
        %397 = vmatpush.bf16.msra.mxu0 0
        %398 = vmatpush.bf16.msra.mxu0 0
        %399 = vmatpush.bf16.msra.mxu0 0
        %400 = vmatpush.bf16.msra.mxu0 0
        %401 = vmatpush.bf16.msra.mxu0 0
        %402 = vmatpush.bf16.msra.mxu0 0
        %403 = vmatpush.bf16.msra.mxu0 0
        %404 = vmatpush.bf16.msra.mxu0 %v395
        %405 = vmatmul.bf16.gmra.mxu0 %v282
        %v406 = vpop.f32.mrf.mxu0
        %v407 = vadd.f32 0.0, %v406
        %v408 = vpop.f32.mrf.mxu0
        %v409 = vadd.f32 0.0, %v408
        %410 = vdwg.mxu0
        %v411 = vpack.c.bf16 %v409, %v407
        %v413 = vsel %vm280, %v411, 0
        %415 = vmatpush.bf16.xpose.msra.mxu0 0
        %416 = vmatpush.bf16.xpose.msra.mxu0 0
        %417 = vmatpush.bf16.xpose.msra.mxu0 0
        %418 = vmatpush.bf16.xpose.msra.mxu0 0
        %419 = vmatpush.bf16.xpose.msra.mxu0 0
        %420 = vmatpush.bf16.xpose.msra.mxu0 0
        %421 = vmatpush.bf16.xpose.msra.mxu0 0
        %422 = vmatpush.bf16.xpose.msra.mxu0 %v312
        %423 = vmatmul.bf16.gmra.mxu0 %v413
        %v424 = vpop.f32.mrf.mxu0
        %v425 = vadd.f32 0.0, %v424
        %v426 = vpop.f32.mrf.mxu0
        %v427 = vadd.f32 0.0, %v426
        %428 = vdwg.mxu0
        %vm429 = vcmp.ge.f32.partialorder %v425, 0.0
        %vm430 = vcmp.ge.f32.partialorder %v427, 0.0
        %v431 = vmul.f32 %v425, 0.2
        %v432 = vmul.f32 %v427, 0.2
        %v433 = vsel %vm429, %v425, %v431
        %v434 = vsel %vm430, %v427, %v432
        %s435 = scalar_lea.vmem %s266, 32
        %v436 = vld [vmem:[%s435] sm:$0xff]
        %v437 = vld [vmem:[%s435 + $0x8] sm:$0xff]
        %v438 = vadd.f32 %v436, %v433
        %v439 = vadd.f32 %v437, %v434
        %s440 = scalar_lea.vmem %s246, 32 [#allocation2]
        %441 = vst.msk [vmem:[%s440] sm:$0xff] %vm338, %v438
        %442 = vst.msk [vmem:[%s440 + $0x8] sm:$0xff] %vm338, %v439
        %s443 = scalar_lea.vmem %s251, 12
        %v444 = vld [vmem:[%s443] sm:$0xf]
        %v446 = vsel %vm284, %v444, 0
        %448 = vmatpush.bf16.msra.mxu0 0
        %449 = vmatpush.bf16.msra.mxu0 0
        %450 = vmatpush.bf16.msra.mxu0 0
        %451 = vmatpush.bf16.msra.mxu0 0
        %452 = vmatpush.bf16.msra.mxu0 0
        %453 = vmatpush.bf16.msra.mxu0 0
        %454 = vmatpush.bf16.msra.mxu0 0
        %455 = vmatpush.bf16.msra.mxu0 %v446
        %456 = vmatmul.bf16.gmra.mxu0 %v282
        %v457 = vpop.f32.mrf.mxu0
        %v458 = vadd.f32 0.0, %v457
        %v459 = vpop.f32.mrf.mxu0
        %v460 = vadd.f32 0.0, %v459
        %461 = vdwg.mxu0
        %v462 = vpack.c.bf16 %v460, %v458
        %v464 = vsel %vm280, %v462, 0
        %466 = vmatpush.bf16.xpose.msra.mxu0 0
        %467 = vmatpush.bf16.xpose.msra.mxu0 0
        %468 = vmatpush.bf16.xpose.msra.mxu0 0
        %469 = vmatpush.bf16.xpose.msra.mxu0 0
        %470 = vmatpush.bf16.xpose.msra.mxu0 0
        %471 = vmatpush.bf16.xpose.msra.mxu0 0
        %472 = vmatpush.bf16.xpose.msra.mxu0 0
        %473 = vmatpush.bf16.xpose.msra.mxu0 %v312
        %474 = vmatmul.bf16.gmra.mxu0 %v464
        %v475 = vpop.f32.mrf.mxu0
        %v476 = vadd.f32 0.0, %v475
        %v477 = vpop.f32.mrf.mxu0
        %v478 = vadd.f32 0.0, %v477
        %479 = vdwg.mxu0
        %vm480 = vcmp.ge.f32.partialorder %v476, 0.0
        %vm481 = vcmp.ge.f32.partialorder %v478, 0.0
        %v482 = vmul.f32 %v476, 0.2
        %v483 = vmul.f32 %v478, 0.2
        %v484 = vsel %vm480, %v476, %v482
        %v485 = vsel %vm481, %v478, %v483
        %s486 = scalar_lea.vmem %s266, 48
        %v487 = vld [vmem:[%s486] sm:$0xff]
        %v488 = vld [vmem:[%s486 + $0x8] sm:$0xff]
        %v489 = vadd.f32 %v487, %v484
        %v490 = vadd.f32 %v488, %v485
        %s491 = scalar_lea.vmem %s246, 48 [#allocation2]
        %492 = vst.msk [vmem:[%s491] sm:$0xff] %vm338, %v489
        %493 = vst.msk [vmem:[%s491 + $0x8] sm:$0xff] %vm338, %v490
        %s494 = sand.u32 %s141, 1
        %s495 = scalar_lea.sflag [#allocation3], %s494
        %s496 = sand.u32 %s141, 1
        %s497 = smul.addr %s496, 64
        %s498 = scalar_lea.vmem [#allocation2], %s497
        // Predicated region
        $region37: #{cma_block_forward.3} parent=35 // pred_check
          %p499 = pneg %p151
        $region38: #{cma_block_forward.3} parent=35 // pred_check_branch
          %501 = sbr.rel (%p499) target = $region40
        $region39: #{cma_block_forward.3} parent=35 // pred_region
          %s502 = smul.u32 2, %s23
          %504 = vsyncadd %s495, 0
          %s505 = smul.addr %s22, 8
          %s506 = sadd.s32 %s502, %s505
          %s507 = smul.addr %s506, 8
          %s508 = scalar_lea.hbm %s4, %s507
          %s509 = sshll.u32 %s498, 4
          %s510 = int_to_ptr.vmem [resolvable:$true] %s509
          %s511 = sshll.u32 %s508, 4
          %s512 = int_to_ptr.hbm [resolvable:$true] %s511
          %517 = dma.vmem_to_hbm [thread:$0]  %s510, 1024, %s512, %s495, 128, 128, 8
        $region40: #{cma_block_forward.3} parent=35 // pred_fallthru
          _
      $region36: #{cma_block_forward.3} parent=5 // pred_fallthru
        _
      %p518 = scmp.le.s32.totalorder 2, %s13
      // Predicated region
      $region41: #{cma_block_forward.3} parent=5 // pred_check
        %p519 = pneg %p518
      $region42: #{cma_block_forward.3} parent=5 // pred_check_branch
        %521 = sbr.rel (%p519) target = $region44
      $region43: #{cma_block_forward.3} parent=5 // pred_region
        %s522 = ssub.s32 %s13, 2
        // Predicated region
        $region45: #{cma_block_forward.3} parent=43 // pred_check
          %p523 = pneg %p157
        $region46: #{cma_block_forward.3} parent=43 // pred_check_branch
          %525 = sbr.rel (%p523) target = $region48
        $region47: #{cma_block_forward.3} parent=43 // pred_region
          %s526 = sand.u32 %s142, 1
          %s527 = scalar_lea.sflag [#allocation3], %s526
          %s528 = sand.u32 %s142, 1
          %s529 = smul.addr %s528, 64
          %s530 = scalar_lea.vmem [#allocation2], %s529
          %532 = dma.done %s527, 1024
        $region48: #{cma_block_forward.3} parent=43 // pred_fallthru
          _
      $region44: #{cma_block_forward.3} parent=5 // pred_fallthru
        _
    $region6: #{cma_block_forward.3} parent=1 // loop_footer
      %s17 = sadd.s32 1, %s13
    $region7: #{cma_block_forward.3} parent=1 // loop_footer_branch
      %12 = sbr.rel target = $region3
    $region8: #{cma_block_forward.3} parent=1 // loop_exit
      _
    %533 = vsyncpa [#allocation3], 1
    %s534 = scalar_lea.sflag [#allocation3], 1
    %535 = vsyncpa %s534, 1

// kernel: cma_block_forward.2
$region0: #{cma_block_forward.2}
  #allocation0 [shape = 'u32[]', space=smem, size = 0x4, offset = 0x4, fixed_abs, tag = 'smem constant byte address 0x4 - core index']
  #allocation1 [shape = 'u32[72,128]{1,0:T(1,128)}', space=vmem, size = 0x9000, scoped, tag = 'internal scratch']
  #allocation2 [shape = 'bf16[17,64]{1,0:T(8,128)(2,1)}', space=vmem, size = 0x1800, scoped, tag = 'scratch operand']
  %s0 = inlined_call_operand.vmem [shape: bf16[2,4,64], index: 0, kind: input, shape index: {}]
  %s1 = inlined_call_operand.vmem [shape: bf16[2,4,64], index: 1, kind: input, shape index: {}]
  %s2 = inlined_call_operand.vmem [shape: bf16[8,4], index: 2, kind: input, shape index: {}]
  %s3 = inlined_call_operand.vmem [shape: f32[8,1], index: 3, kind: input, shape index: {}]
  %s4 = inlined_call_operand.vmem [shape: bf16[16,4], index: 4, kind: input, shape index: {}]
  %s5 = inlined_call_operand.vmem [shape: f32[16,1], index: 5, kind: input, shape index: {}]
  %s6 = inlined_call_operand.vmem [shape: bf16[4,8], index: 6, kind: input, shape index: {}]
  %s7 = inlined_call_operand.vmem [shape: f32[4,1], index: 7, kind: input, shape index: {}]
  %s8 = inlined_call_operand.vmem [shape: bf16[2,4,64], index: 8, kind: output, shape index: {}]
  %s9 = sld [smem:[#allocation0]]
  $region69: #{cma_block_forward.2} parent=0
    _
  %s11 = ssub.s32 1, %s9
  %s12 = scalar_select 0, %s11, %s9
  loop: start=0, step=1, limit=4
  $region2: #{cma_block_forward.2} parent=0 // loop_pre_header
    _
  $region3: #{cma_block_forward.2} parent=0 // loop_header
    %s14 = sphi 0, %s18
    %p15 = scmp.ge.s32.totalorder %s14, 4
    %s21 = sphi 0, %s33
    %s22 = sphi 0, %s29
    %s23 = sphi 0, %s21
    %s24 = sphi 0, %s22
    %s25 = sphi 0, %s23
    %s26 = sphi 0, %s24
    %s38 = sphi 0, %s40
    %s41 = sphi 0, %s38
    %s42 = sphi 0, %s41
    %s58 = sphi 0, %s42
    %s64 = sphi 0, %s66
    %s67 = sphi 0, %s64
    %s68 = sphi 0, %s67
    %s84 = sphi 0, %s68
    %s88 = sphi 0, %s88
    %s90 = sphi 0, %s88
    %s91 = sphi 0, %s90
    %s105 = sphi 0, %s91
    %s109 = sphi 0, %s109
    %s111 = sphi 0, %s109
    %s112 = sphi 0, %s111
    %s126 = sphi 0, %s112
    %s130 = sphi 0, %s130
    %s132 = sphi 0, %s130
    %s133 = sphi 0, %s132
    %s147 = sphi 0, %s133
    %s151 = sphi 0, %s151
    %s153 = sphi 0, %s151
    %s154 = sphi 0, %s153
    %s168 = sphi 0, %s154
    %s172 = sphi 0, %s172
    %s174 = sphi 0, %s172
    %s175 = sphi 0, %s174
    %s189 = sphi 0, %s175
    %s193 = sphi 0, %s193
    %s195 = sphi 0, %s193
    %s196 = sphi 0, %s195
    %s210 = sphi 0, %s196
    %s218 = sphi 0, %s220
    %s221 = sphi 0, %s218
    %s222 = sphi 0, %s221
    %s238 = sphi 0, %s222
  $region4: #{cma_block_forward.2} parent=0 // loop_header_branch
    %17 = sbr.rel (%p15) target = $region8
  $region5: #{cma_block_forward.2} parent=0 // loop_body
    %s19 = ssub.s32 %s14, 1
    %s20 = ssub.s32 %s14, 2
    %s27 = sadd.s32 1, %s22
    %p28 = scmp.ge.s32.totalorder %s27, 1
    %s29 = scalar_select %p28, 0, %s27
    %s30 = sadd.s32 1, %s21
    %s31 = scalar_select %p28, %s30, %s21
    %p32 = scmp.ge.s32.totalorder %s31, 2
    %s33 = scalar_select %p32, 0, %s31
    %s34 = ssub.s32 %s21, %s33
    %s35 = ssub.s32 %s22, %s29
    %s36 = sor.u32 %s34, %s35
    %p37 = scmp.eq.s32.totalorder %s36, 0
    %s39 = sadd.s32 %s38, 1
    %s40 = scalar_select %p37, %s38, %s39
    %p43 = pneg %p37
    %p44 = scmp.eq.s32.totalorder %s14, 1
    %p45 = por %p43, %p44
    %p46 = scmp.ne.s32.totalorder %s38, %s41
    %p47 = scmp.eq.s32.totalorder %s14, 0
    %p48 = por %p46, %p47
    %p49 = scmp.ne.s32.totalorder %s38, %s41
    %p50 = scmp.eq.s32.totalorder %s19, 1
    %p51 = por %p49, %p50
    %p52 = scmp.ne.s32.totalorder %s41, %s42
    %p53 = scmp.eq.s32.totalorder %s19, 0
    %p54 = por %p52, %p53
    %p55 = scmp.ne.s32.totalorder %s41, %s42
    %p56 = scmp.eq.s32.totalorder %s20, 1
    %p57 = por %p55, %p56
    %p59 = scmp.ne.s32.totalorder %s42, %s58
    %p60 = scmp.eq.s32.totalorder %s20, 0
    %p61 = por %p59, %p60
    %s62 = ssub.s32 %s21, %s33
    %p63 = scmp.eq.s32.totalorder %s62, 0
    %s65 = sadd.s32 %s64, 1
    %s66 = scalar_select %p63, %s64, %s65
    %p69 = pneg %p63
    %p70 = scmp.eq.s32.totalorder %s14, 1
    %p71 = por %p69, %p70
    %p72 = scmp.ne.s32.totalorder %s64, %s67
    %p73 = scmp.eq.s32.totalorder %s14, 0
    %p74 = por %p72, %p73
    %p75 = scmp.ne.s32.totalorder %s64, %s67
    %p76 = scmp.eq.s32.totalorder %s19, 1
    %p77 = por %p75, %p76
    %p78 = scmp.ne.s32.totalorder %s67, %s68
    %p79 = scmp.eq.s32.totalorder %s19, 0
    %p80 = por %p78, %p79
    %p81 = scmp.ne.s32.totalorder %s67, %s68
    %p82 = scmp.eq.s32.totalorder %s20, 1
    %p83 = por %p81, %p82
    %p85 = scmp.ne.s32.totalorder %s68, %s84
    %p86 = scmp.eq.s32.totalorder %s20, 0
    %p87 = por %p85, %p86
    %s89 = sadd.s32 %s88, 1
    %p92 = scmp.eq.s32.totalorder %s14, 1
    %p93 = scmp.ne.s32.totalorder %s88, %s90
    %p94 = scmp.eq.s32.totalorder %s14, 0
    %p95 = por %p93, %p94
    %p96 = scmp.ne.s32.totalorder %s88, %s90
    %p97 = scmp.eq.s32.totalorder %s19, 1
    %p98 = por %p96, %p97
    %p99 = scmp.ne.s32.totalorder %s90, %s91
    %p100 = scmp.eq.s32.totalorder %s19, 0
    %p101 = por %p99, %p100
    %p102 = scmp.ne.s32.totalorder %s90, %s91
    %p103 = scmp.eq.s32.totalorder %s20, 1
    %p104 = por %p102, %p103
    %p106 = scmp.ne.s32.totalorder %s91, %s105
    %p107 = scmp.eq.s32.totalorder %s20, 0
    %p108 = por %p106, %p107
    %s110 = sadd.s32 %s109, 1
    %p113 = scmp.eq.s32.totalorder %s14, 1
    %p114 = scmp.ne.s32.totalorder %s109, %s111
    %p115 = scmp.eq.s32.totalorder %s14, 0
    %p116 = por %p114, %p115
    %p117 = scmp.ne.s32.totalorder %s109, %s111
    %p118 = scmp.eq.s32.totalorder %s19, 1
    %p119 = por %p117, %p118
    %p120 = scmp.ne.s32.totalorder %s111, %s112
    %p121 = scmp.eq.s32.totalorder %s19, 0
    %p122 = por %p120, %p121
    %p123 = scmp.ne.s32.totalorder %s111, %s112
    %p124 = scmp.eq.s32.totalorder %s20, 1
    %p125 = por %p123, %p124
    %p127 = scmp.ne.s32.totalorder %s112, %s126
    %p128 = scmp.eq.s32.totalorder %s20, 0
    %p129 = por %p127, %p128
    %s131 = sadd.s32 %s130, 1
    %p134 = scmp.eq.s32.totalorder %s14, 1
    %p135 = scmp.ne.s32.totalorder %s130, %s132
    %p136 = scmp.eq.s32.totalorder %s14, 0
    %p137 = por %p135, %p136
    %p138 = scmp.ne.s32.totalorder %s130, %s132
    %p139 = scmp.eq.s32.totalorder %s19, 1
    %p140 = por %p138, %p139
    %p141 = scmp.ne.s32.totalorder %s132, %s133
    %p142 = scmp.eq.s32.totalorder %s19, 0
    %p143 = por %p141, %p142
    %p144 = scmp.ne.s32.totalorder %s132, %s133
    %p145 = scmp.eq.s32.totalorder %s20, 1
    %p146 = por %p144, %p145
    %p148 = scmp.ne.s32.totalorder %s133, %s147
    %p149 = scmp.eq.s32.totalorder %s20, 0
    %p150 = por %p148, %p149
    %s152 = sadd.s32 %s151, 1
    %p155 = scmp.eq.s32.totalorder %s14, 1
    %p156 = scmp.ne.s32.totalorder %s151, %s153
    %p157 = scmp.eq.s32.totalorder %s14, 0
    %p158 = por %p156, %p157
    %p159 = scmp.ne.s32.totalorder %s151, %s153
    %p160 = scmp.eq.s32.totalorder %s19, 1
    %p161 = por %p159, %p160
    %p162 = scmp.ne.s32.totalorder %s153, %s154
    %p163 = scmp.eq.s32.totalorder %s19, 0
    %p164 = por %p162, %p163
    %p165 = scmp.ne.s32.totalorder %s153, %s154
    %p166 = scmp.eq.s32.totalorder %s20, 1
    %p167 = por %p165, %p166
    %p169 = scmp.ne.s32.totalorder %s154, %s168
    %p170 = scmp.eq.s32.totalorder %s20, 0
    %p171 = por %p169, %p170
    %s173 = sadd.s32 %s172, 1
    %p176 = scmp.eq.s32.totalorder %s14, 1
    %p177 = scmp.ne.s32.totalorder %s172, %s174
    %p178 = scmp.eq.s32.totalorder %s14, 0
    %p179 = por %p177, %p178
    %p180 = scmp.ne.s32.totalorder %s172, %s174
    %p181 = scmp.eq.s32.totalorder %s19, 1
    %p182 = por %p180, %p181
    %p183 = scmp.ne.s32.totalorder %s174, %s175
    %p184 = scmp.eq.s32.totalorder %s19, 0
    %p185 = por %p183, %p184
    %p186 = scmp.ne.s32.totalorder %s174, %s175
    %p187 = scmp.eq.s32.totalorder %s20, 1
    %p188 = por %p186, %p187
    %p190 = scmp.ne.s32.totalorder %s175, %s189
    %p191 = scmp.eq.s32.totalorder %s20, 0
    %p192 = por %p190, %p191
    %s194 = sadd.s32 %s193, 1
    %p197 = scmp.eq.s32.totalorder %s14, 1
    %p198 = scmp.ne.s32.totalorder %s193, %s195
    %p199 = scmp.eq.s32.totalorder %s14, 0
    %p200 = por %p198, %p199
    %p201 = scmp.ne.s32.totalorder %s193, %s195
    %p202 = scmp.eq.s32.totalorder %s19, 1
    %p203 = por %p201, %p202
    %p204 = scmp.ne.s32.totalorder %s195, %s196
    %p205 = scmp.eq.s32.totalorder %s19, 0
    %p206 = por %p204, %p205
    %p207 = scmp.ne.s32.totalorder %s195, %s196
    %p208 = scmp.eq.s32.totalorder %s20, 1
    %p209 = por %p207, %p208
    %p211 = scmp.ne.s32.totalorder %s196, %s210
    %p212 = scmp.eq.s32.totalorder %s20, 0
    %p213 = por %p211, %p212
    %s214 = ssub.s32 %s21, %s33
    %s215 = ssub.s32 %s22, %s29
    %s216 = sor.u32 %s214, %s215
    %p217 = scmp.eq.s32.totalorder %s216, 0
    %s219 = sadd.s32 %s218, 1
    %s220 = scalar_select %p217, %s218, %s219
    %p223 = pneg %p217
    %p224 = scmp.eq.s32.totalorder %s14, 1
    %p225 = por %p223, %p224
    %p226 = scmp.ne.s32.totalorder %s218, %s221
    %p227 = scmp.eq.s32.totalorder %s14, 0
    %p228 = por %p226, %p227
    %p229 = scmp.ne.s32.totalorder %s218, %s221
    %p230 = scmp.eq.s32.totalorder %s19, 1
    %p231 = por %p229, %p230
    %p232 = scmp.ne.s32.totalorder %s221, %s222
    %p233 = scmp.eq.s32.totalorder %s19, 0
    %p234 = por %p232, %p233
    %p235 = scmp.ne.s32.totalorder %s221, %s222
    %p236 = scmp.eq.s32.totalorder %s20, 1
    %p237 = por %p235, %p236
    %p239 = scmp.ne.s32.totalorder %s222, %s238
    %p240 = scmp.eq.s32.totalorder %s20, 0
    %p241 = por %p239, %p240
    %p242 = scmp.le.s32.totalorder 1, %s14
    %p243 = scmp.lt.s32.totalorder %s14, 3
    %p244 = pnand %p242, %p243
    %p245 = pneg %p244
    // Predicated region
    $region9: #{cma_block_forward.2} parent=5 // pred_check
      _
    $region10: #{cma_block_forward.2} parent=5 // pred_check_branch
      %247 = sbr.rel (%p244) target = $region12
    $region11: #{cma_block_forward.2} parent=5 // pred_region
      %s248 = ssub.s32 %s14, 1
      // Predicated region
      $region13: #{cma_block_forward.2} parent=11 // pred_check
        %p249 = pneg %p101
      $region14: #{cma_block_forward.2} parent=11 // pred_check_branch
        %251 = sbr.rel (%p249) target = $region16
      $region15: #{cma_block_forward.2} parent=11 // pred_region
        _
      $region16: #{cma_block_forward.2} parent=11 // pred_fallthru
        _
      // Predicated region
      $region17: #{cma_block_forward.2} parent=11 // pred_check
        %p252 = pneg %p122
      $region18: #{cma_block_forward.2} parent=11 // pred_check_branch
        %254 = sbr.rel (%p252) target = $region20
      $region19: #{cma_block_forward.2} parent=11 // pred_region
        _
      $region20: #{cma_block_forward.2} parent=11 // pred_fallthru
        _
      // Predicated region
      $region21: #{cma_block_forward.2} parent=11 // pred_check
        %p255 = pneg %p143
      $region22: #{cma_block_forward.2} parent=11 // pred_check_branch
        %257 = sbr.rel (%p255) target = $region24
      $region23: #{cma_block_forward.2} parent=11 // pred_region
        _
      $region24: #{cma_block_forward.2} parent=11 // pred_fallthru
        _
      // Predicated region
      $region25: #{cma_block_forward.2} parent=11 // pred_check
        %p258 = pneg %p164
      $region26: #{cma_block_forward.2} parent=11 // pred_check_branch
        %260 = sbr.rel (%p258) target = $region28
      $region27: #{cma_block_forward.2} parent=11 // pred_region
        _
      $region28: #{cma_block_forward.2} parent=11 // pred_fallthru
        _
      // Predicated region
      $region29: #{cma_block_forward.2} parent=11 // pred_check
        %p261 = pneg %p185
      $region30: #{cma_block_forward.2} parent=11 // pred_check_branch
        %263 = sbr.rel (%p261) target = $region32
      $region31: #{cma_block_forward.2} parent=11 // pred_region
        _
      $region32: #{cma_block_forward.2} parent=11 // pred_fallthru
        _
      // Predicated region
      $region33: #{cma_block_forward.2} parent=11 // pred_check
        %p264 = pneg %p206
      $region34: #{cma_block_forward.2} parent=11 // pred_check_branch
        %266 = sbr.rel (%p264) target = $region36
      $region35: #{cma_block_forward.2} parent=11 // pred_region
        _
      $region36: #{cma_block_forward.2} parent=11 // pred_fallthru
        _
    $region12: #{cma_block_forward.2} parent=5 // pred_fallthru
      _
    %p267 = scmp.lt.s32.totalorder %s14, 2
    // Predicated region
    $region37: #{cma_block_forward.2} parent=5 // pred_check
      %p268 = pneg %p267
    $region38: #{cma_block_forward.2} parent=5 // pred_check_branch
      %270 = sbr.rel (%p268) target = $region40
    $region39: #{cma_block_forward.2} parent=5 // pred_region
      // Predicated region
      $region41: #{cma_block_forward.2} parent=39 // pred_check
        %p271 = pneg %p48
      $region42: #{cma_block_forward.2} parent=39 // pred_check_branch
        %273 = sbr.rel (%p271) target = $region44
      $region43: #{cma_block_forward.2} parent=39 // pred_region
        %p274 = scmp.lt.s32.totalorder %s21, 1
        %s275 = scalar_select %p274, %s21, 1
        %p276 = scmp.lt.s32.totalorder %s22, 0
        %s277 = scalar_select %p276, %s22, 0
        %s278 = sadd.s32 %s277, %s275
        %s279 = smul.addr %s278, 2
        %s280 = scalar_lea.vmem %s0, %s279
      $region44: #{cma_block_forward.2} parent=39 // pred_fallthru
        _
      // Predicated region
      $region45: #{cma_block_forward.2} parent=39 // pred_check
        %p281 = pneg %p74
      $region46: #{cma_block_forward.2} parent=39 // pred_check_branch
        %283 = sbr.rel (%p281) target = $region48
      $region47: #{cma_block_forward.2} parent=39 // pred_region
        %p284 = scmp.lt.s32.totalorder %s21, 1
        %s285 = scalar_select %p284, %s21, 1
        %s286 = smul.addr %s285, 2
        %s287 = scalar_lea.vmem %s1, %s286
      $region48: #{cma_block_forward.2} parent=39 // pred_fallthru
        _
    $region40: #{cma_block_forward.2} parent=5 // pred_fallthru
      _
    %p288 = scmp.le.s32.totalorder 1, %s14
    %p289 = scmp.lt.s32.totalorder %s14, 3
    %p290 = pnand %p288, %p289
    %p291 = pneg %p290
    // Predicated region
    $region49: #{cma_block_forward.2} parent=5 // pred_check
      _
    $region50: #{cma_block_forward.2} parent=5 // pred_check_branch
      %293 = sbr.rel (%p290) target = $region52
    $region51: #{cma_block_forward.2} parent=5 // pred_region
      %s294 = ssub.s32 %s14, 1
      %p295 = scmp.lt.s32.totalorder %s23, 1
      %s296 = scalar_select %p295, %s23, 1
      %p297 = scmp.lt.s32.totalorder %s24, 0
      %s298 = scalar_select %p297, %s24, 0
      %s299 = sadd.s32 %s298, %s296
      %s300 = smul.addr %s299, 2
      %s301 = scalar_lea.vmem %s0, %s300
      %p302 = pneg %p54
      %p303 = pneg %p51
      %p304 = scmp.lt.s32.totalorder %s23, 1
      %s305 = scalar_select %p304, %s23, 1
      %s306 = smul.addr %s305, 2
      %s307 = scalar_lea.vmem %s1, %s306
      %p308 = pneg %p80
      %p309 = pneg %p77
      %p310 = pneg %p101
      %p311 = pneg %p98
      %p312 = pneg %p122
      %p313 = pneg %p119
      %p314 = pneg %p143
      %p315 = pneg %p140
      %p316 = pneg %p164
      %p317 = pneg %p161
      %p318 = pneg %p185
      %p319 = pneg %p182
      %p320 = pneg %p206
      %p321 = pneg %p203
      %p322 = pneg %p234
      %p323 = pneg %p231
      %p324 = scmp.lt.s32.totalorder %s23, 1
      %s325 = scalar_select %p324, %s23, 1
      %p326 = scmp.lt.s32.totalorder %s24, 0
      %s327 = scalar_select %p326, %s24, 0
      %s328 = sadd.s32 %s327, %s325
      %s329 = smul.addr %s328, 2
      %s330 = scalar_lea.vmem %s8, %s329
      %p331 = scmp.lt.s32.totalorder %s23, 1
      %s332 = scalar_select %p331, %s23, 1
      %p333 = scmp.lt.s32.totalorder %s24, 0
      %s334 = scalar_select %p333, %s24, 0
      %s335 = sadd.s32 %s334, %s332
      %s336 = smul.addr %s335, 2
      %s337 = scalar_lea.vmem %s0, %s336
      %p338 = scmp.lt.s32.totalorder %s23, 1
      %s339 = scalar_select %p338, %s23, 1
      %s340 = smul.addr %s339, 2
      %s341 = scalar_lea.vmem %s1, %s340
      %p342 = scmp.lt.s32.totalorder %s23, 1
      %s343 = scalar_select %p342, %s23, 1
      %p344 = scmp.lt.s32.totalorder %s24, 0
      %s345 = scalar_select %p344, %s24, 0
      %s346 = sadd.s32 %s345, %s343
      %s347 = smul.addr %s346, 2
      %s348 = scalar_lea.vmem %s8, %s347
      %p351 = scmp.eq.s32.totalorder %s24, 0
      // Predicated region
      $region53: #{cma_block_forward.2} parent=51 // pred_check
        %p352 = pneg %p351
      $region54: #{cma_block_forward.2} parent=51 // pred_check_branch
        %354 = sbr.rel (%p352) target = $region56
      $region55: #{cma_block_forward.2} parent=51 // pred_region
        %v355 = vld [vmem:[%s4] sm:$0xf]
        %v356 = vld [vmem:[%s4 + $0x4] sm:$0xf]
        %v357 = vld [vmem:[%s341] sm:$0x3]
        %v358 = vld [vmem:[%s5] sm:$0xff]
        %v359 = vld [vmem:[%s5 + $0x8] sm:$0xff]
        %361 = vset.pattern.permute.xlu0 0
        %362 = vperm.xlu0 %361, %v358
        %v363 = vpop.permute.xlu0 %362
        %366 = vset.pattern.permute.xlu0 0
        %367 = vperm.xlu0 %366, %v359
        %v368 = vpop.permute.xlu0 %367
        %v372 = vunpack.c.l.b16 %v355
        %v373 = vunpack.c.l.b16 %v356
        %v374 = vpack.c.b16 %v373, %v372
        %vm375 = vcmask 31744
        %v377 = vsel %vm375, %v374, 0
        %vm379 = vcmask 1041408
        %v381 = vsel %vm379, %v357, 0
        %383 = vmatpush.bf16.msra.mxu0 0
        %384 = vmatpush.bf16.msra.mxu0 0
        %385 = vmatpush.bf16.msra.mxu0 0
        %386 = vmatpush.bf16.msra.mxu0 0
        %387 = vmatpush.bf16.msra.mxu0 0
        %388 = vmatpush.bf16.msra.mxu0 0
        %389 = vmatpush.bf16.msra.mxu0 0
        %390 = vmatpush.bf16.msra.mxu0 %v381
        %391 = vmatmul.bf16.gmra.mxu0 %v377
        %v392 = vpop.f32.mrf.mxu0
        %v393 = vadd.f32 %v363, %v392
        %v394 = vpop.f32.mrf.mxu0
        %v395 = vadd.f32 %v368, %v394
        %396 = vdwg.mxu0
        %v397 = vpack.c.bf16 %v393, %v393
        %v398 = vpack.c.bf16 %v395, %v395
        %vm399 = vcmask 519168
        %400 = vst.msk [vmem:[#allocation2] sm:$0xf] %vm399, %v397
        %401 = vst.msk [vmem:[#allocation2 + $0x4] sm:$0xf] %vm399, %v398
        %vm402 = vcmask 516096
        %vm403 = vsmask.f32 256
        %vm404 = vmand %vm402, %vm403
        %v405 = vld [vmem:[#allocation2 + $0x8] sm:$0x1]
        %v406 = vsel %vm404, 1065369472, %v405
        %407 = vst [vmem:[#allocation2 + $0x8] sm:$0x1] %v406
      $region56: #{cma_block_forward.2} parent=51 // pred_fallthru
        _
      %v408 = vld [vmem:[%s2] sm:$0xf]
      %v409 = vld [vmem:[%s337] sm:$0x3]
      %v410 = vld [vmem:[%s3] sm:$0xff]
      %412 = vset.pattern.permute.xlu0 0
      %413 = vperm.xlu0 %412, %v410
      %v414 = vpop.permute.xlu0 %413
      %vm416 = vcmask 31744
      %v418 = vsel %vm416, %v408, 0
      %vm420 = vcmask 1041408
      %v422 = vsel %vm420, %v409, 0
      %424 = vmatpush.bf16.msra.mxu0 0
      %425 = vmatpush.bf16.msra.mxu0 0
      %426 = vmatpush.bf16.msra.mxu0 0
      %427 = vmatpush.bf16.msra.mxu0 0
      %428 = vmatpush.bf16.msra.mxu0 0
      %429 = vmatpush.bf16.msra.mxu0 0
      %430 = vmatpush.bf16.msra.mxu0 0
      %431 = vmatpush.bf16.msra.mxu0 %v422
      %432 = vmatmul.bf16.gmra.mxu0 %v418
      %v433 = vpop.f32.mrf.mxu0
      %v434 = vadd.f32 %v414, %v433
      %v435 = vpop.f32.mrf.mxu0
      %436 = vdwg.mxu0
      %v437 = vld [vmem:[#allocation2] sm:$0xf]
      %v438 = vpack.c.bf16 %v434, %v434
      %439 = vxpose.xlu0.c.b16.start [1/8] %v438, 128
      %440 = vxpose.xlu0.c.b16.cont [2/8] 0, 128
      %441 = vxpose.xlu0.c.b16.cont [3/8] 0, 128
      %442 = vxpose.xlu0.c.b16.cont [4/8] 0, 128
      %443 = vxpose.xlu0.c.b16.cont [5/8] 0, 128
      %444 = vxpose.xlu0.c.b16.cont [6/8] 0, 128
      %445 = vxpose.xlu0.c.b16.cont [7/8] 0, 128
      %446 = vxpose.xlu0.c.b16.end [8/8] 0, 128
      %v447 = vpop.trf.xlu0
      %v448 = vpop.trf.xlu0
      %v449 = vpop.trf.xlu0
      %v450 = vpop.trf.xlu0
      %v451 = vpop.trf.xlu0
      %v452 = vpop.trf.xlu0
      %v453 = vpop.trf.xlu0
      %v454 = vpop.trf.xlu0
      %vm455 = vcmask 64512
      %v457 = vsel %vm455, %v447, 0
      %v460 = vsel %vm455, %v448, 0
      %v463 = vsel %vm455, %v449, 0
      %v466 = vsel %vm455, %v450, 0
      %vm468 = vcmask 1043456
      %v470 = vsel %vm468, %v437, 0
      %472 = vmatpush.bf16.msra.mxu0 0
      %473 = vmatpush.bf16.msra.mxu0 0
      %474 = vmatpush.bf16.msra.mxu0 0
      %475 = vmatpush.bf16.msra.mxu0 0
      %476 = vmatpush.bf16.msra.mxu0 0
      %477 = vmatpush.bf16.msra.mxu0 0
      %478 = vmatpush.bf16.msra.mxu0 0
      %479 = vmatpush.bf16.msra.mxu0 %v470
      %480 = vmatmul.bf16.gmra.mxu0 %v457
      %v481 = vpop.f32.mrf.mxu0
      %v482 = vadd.f32 0.0, %v481
      %v483 = vpop.f32.mrf.mxu0
      %v484 = vadd.f32 0.0, %v483
      %485 = vmatmul.bf16.gmra.mxu0 %v460
      %v486 = vpop.f32.mrf.mxu0
      %v487 = vadd.f32 0.0, %v486
      %v488 = vpop.f32.mrf.mxu0
      %v489 = vadd.f32 0.0, %v488
      %490 = vmatmul.bf16.gmra.mxu0 %v463
      %v491 = vpop.f32.mrf.mxu0
      %v492 = vadd.f32 0.0, %v491
      %v493 = vpop.f32.mrf.mxu0
      %v494 = vadd.f32 0.0, %v493
      %495 = vmatmul.bf16.gmra.mxu0 %v466
      %v496 = vpop.f32.mrf.mxu0
      %v497 = vadd.f32 0.0, %v496
      %v498 = vpop.f32.mrf.mxu0
      %v499 = vadd.f32 0.0, %v498
      %500 = vdwg.mxu0
      %vm501 = vcmask 523264
      %v502 = vsel %vm501, %v482, -inf
      %503 = vmax.xlane.f32.xlu0 %v502
      %v504 = vpop.xlane.xlu0 %503
      %v505 = vsel %vm501, %v484, -inf
      %506 = vmax.xlane.f32.xlu0 %v505
      %v507 = vpop.xlane.xlu0 %506
      %v508 = vsel %vm501, %v487, -inf
      %509 = vmax.xlane.f32.xlu0 %v508
      %v510 = vpop.xlane.xlu0 %509
      %v511 = vsel %vm501, %v489, -inf
      %512 = vmax.xlane.f32.xlu0 %v511
      %v513 = vpop.xlane.xlu0 %512
      %v514 = vsel %vm501, %v492, -inf
      %515 = vmax.xlane.f32.xlu0 %v514
      %v516 = vpop.xlane.xlu0 %515
      %v517 = vsel %vm501, %v494, -inf
      %518 = vmax.xlane.f32.xlu0 %v517
      %v519 = vpop.xlane.xlu0 %518
      %v520 = vsel %vm501, %v497, -inf
      %521 = vmax.xlane.f32.xlu0 %v520
      %v522 = vpop.xlane.xlu0 %521
      %v523 = vsel %vm501, %v499, -inf
      %524 = vmax.xlane.f32.xlu0 %v523
      %v525 = vpop.xlane.xlu0 %524
      %v526 = vsub.f32 %v482, %v504
      %v527 = vsub.f32 %v484, %v507
      %v528 = vsub.f32 %v487, %v510
      %v529 = vsub.f32 %v489, %v513
      %v530 = vsub.f32 %v492, %v516
      %v531 = vsub.f32 %v494, %v519
      %v532 = vsub.f32 %v497, %v522
      %v533 = vsub.f32 %v499, %v525
      %v534 = vmul.f32 %v526, 1.442695
      %v535 = vpow.pop %v534
      %v536 = vmul.f32 %v527, 1.442695
      %v537 = vpow.pop %v536
      %v538 = vmul.f32 %v528, 1.442695
      %v539 = vpow.pop %v538
      %v540 = vmul.f32 %v529, 1.442695
      %v541 = vpow.pop %v540
      %v542 = vmul.f32 %v530, 1.442695
      %v543 = vpow.pop %v542
      %v544 = vmul.f32 %v531, 1.442695
      %v545 = vpow.pop %v544
      %v546 = vmul.f32 %v532, 1.442695
      %v547 = vpow.pop %v546
      %v548 = vmul.f32 %v533, 1.442695
      %v549 = vpow.pop %v548
      %v550 = vpack.c.bf16 %v537, %v535
      %v551 = vpack.c.bf16 %v541, %v539
      %v552 = vpack.c.bf16 %v545, %v543
      %v553 = vpack.c.bf16 %v549, %v547
      %v554 = vld [vmem:[#allocation2 + $0x4] sm:$0xf]
      %v555 = vld [vmem:[#allocation2 + $0x8] sm:$0x1]
      %v558 = vunpack.c.l.b16 %v554
      %v559 = vunpack.c.l.b16 %v555
      %v560 = vpack.c.b16 %v559, %v558
      %v562 = vsel %vm501, %v560, 0
      %v565 = vsel %vm501, %v550, 0
      %v568 = vsel %vm501, %v551, 0
      %v571 = vsel %vm501, %v552, 0
      %v574 = vsel %vm501, %v553, 0
      %576 = vmatpush.bf16.xpose.msra.mxu0 0
      %577 = vmatpush.bf16.xpose.msra.mxu0 0
      %578 = vmatpush.bf16.xpose.msra.mxu0 0
      %579 = vmatpush.bf16.xpose.msra.mxu0 0
      %580 = vmatpush.bf16.xpose.msra.mxu0 %v574
      %581 = vmatpush.bf16.xpose.msra.mxu0 %v571
      %582 = vmatpush.bf16.xpose.msra.mxu0 %v568
      %583 = vmatpush.bf16.xpose.msra.mxu0 %v565
      %584 = vmatmul.bf16.gmra.mxu0 %v562
      %v585 = vpop.f32.mrf.mxu0
      %v586 = vadd.f32 0.0, %v585
      %v587 = vpop.f32.mrf.mxu0
      %v588 = vadd.f32 0.0, %v587
      %589 = vdwg.mxu0
      %v590 = vrcp.pop %v588
      %v591 = vperm.slane %v590, 0
      %v592 = vmul.f32 %v586, %v591
      %v593 = vld [vmem:[%s6] sm:$0x3]
      %v594 = vpack.c.bf16 %v592, %v592
      %v595 = vld [vmem:[%s7] sm:$0xf]
      %597 = vset.pattern.permute.xlu0 0
      %598 = vperm.xlu0 %597, %v595
      %v599 = vpop.permute.xlu0 %598
      %v602 = vsel %vm455, %v593, 0
      %v605 = vsel %vm468, %v594, 0
      %607 = vmatpush.bf16.msra.mxu0 0
      %608 = vmatpush.bf16.msra.mxu0 0
      %609 = vmatpush.bf16.msra.mxu0 0
      %610 = vmatpush.bf16.msra.mxu0 0
      %611 = vmatpush.bf16.msra.mxu0 0
      %612 = vmatpush.bf16.msra.mxu0 0
      %613 = vmatpush.bf16.msra.mxu0 0
      %614 = vmatpush.bf16.msra.mxu0 %v605
      %615 = vmatmul.bf16.gmra.mxu0 %v602
      %v616 = vpop.f32.mrf.mxu0
      %v617 = vadd.f32 %v599, %v616
      %v618 = vpop.f32.mrf.mxu0
      %619 = vdwg.mxu0
      %v620 = vpack.c.bf16 %v617, %v617
      %vm621 = vcmask 517120
      %622 = vst.msk [vmem:[%s348] sm:$0x3] %vm621, %v620
      %p623 = scmp.lt.s32.totalorder %s23, 1
      %s624 = scalar_select %p623, %s23, 1
      %p625 = scmp.lt.s32.totalorder %s24, 0
      %s626 = scalar_select %p625, %s24, 0
      %s627 = sadd.s32 %s626, %s624
      %s628 = smul.addr %s627, 2
      %s629 = scalar_lea.vmem %s8, %s628
      // Predicated region
      $region57: #{cma_block_forward.2} parent=51 // pred_check
        %p630 = pneg %p231
      $region58: #{cma_block_forward.2} parent=51 // pred_check_branch
        %632 = sbr.rel (%p630) target = $region60
      $region59: #{cma_block_forward.2} parent=51 // pred_region
        _
      $region60: #{cma_block_forward.2} parent=51 // pred_fallthru
        _
    $region52: #{cma_block_forward.2} parent=5 // pred_fallthru
      _
    %p633 = scmp.le.s32.totalorder 2, %s14
    // Predicated region
    $region61: #{cma_block_forward.2} parent=5 // pred_check
      %p634 = pneg %p633
    $region62: #{cma_block_forward.2} parent=5 // pred_check_branch
      %636 = sbr.rel (%p634) target = $region64
    $region63: #{cma_block_forward.2} parent=5 // pred_region
      %s637 = ssub.s32 %s14, 2
      // Predicated region
      $region65: #{cma_block_forward.2} parent=63 // pred_check
        %p638 = pneg %p237
      $region66: #{cma_block_forward.2} parent=63 // pred_check_branch
        %640 = sbr.rel (%p638) target = $region68
      $region67: #{cma_block_forward.2} parent=63 // pred_region
        %p641 = scmp.lt.s32.totalorder %s25, 1
        %s642 = scalar_select %p641, %s25, 1
        %p643 = scmp.lt.s32.totalorder %s26, 0
        %s644 = scalar_select %p643, %s26, 0
        %s645 = sadd.s32 %s644, %s642
        %s646 = smul.addr %s645, 2
        %s647 = scalar_lea.vmem %s8, %s646
      $region68: #{cma_block_forward.2} parent=63 // pred_fallthru
        _
    $region64: #{cma_block_forward.2} parent=5 // pred_fallthru
      _
  $region6: #{cma_block_forward.2} parent=0 // loop_footer
    %s18 = sadd.s32 1, %s14
  $region7: #{cma_block_forward.2} parent=0 // loop_footer_branch
    %13 = sbr.rel target = $region3
  $region8: #{cma_block_forward.2} parent=0 // loop_exit
    _

</llo_original>
